<compile_context>
chip_gen: v5e
topology: v5e:2x2
jax: 0.10.0
libtpu: 0.0.40
codegen_flags: <defaults>
</compile_context>

<pallas_src>
import functools

import jax
import jax.numpy as jnp
from jax import lax
from jax.experimental import pallas as pl
from jax.experimental.pallas import tpu as pltpu

LRELU_SLOPE = 0.1            # hps.lrelu_slope in HiFi-GAN
KERNEL_SIZE = 3
DILATIONS = (1, 3, 5)
N_CONV = 2 * len(DILATIONS)  # [c1_0, c2_0, c1_1, c2_1, c1_2, c2_2]
RF = sum(d + 1 for d in DILATIONS)   # receptive-field radius of the block = 12
HALO = 16                    # halo rows carried per side (>= RF, multiple of 8)
LANE = 128


def _round_up(v, m):
    return ((v + m - 1) // m) * m


def _leaky(v, slope):
    return jnp.where(v >= 0, v, slope * v)


def resblock_kernel(x_ref, w_ref, b_ref, o_ref, *, tile_t, t_valid, lrelu_slope):
    """One (batch, time-tile) step of the full ResBlock.

    x_ref : (1, 1, ext, Cp)    extended tile [left halo | tile | right halo]
    w_ref : (N_CONV, K*Cp, Cp) weights, rows ordered (k, cin)
    b_ref : (N_CONV, Cp)       biases (float32)
    o_ref : (1, tile_t, Cp)
    """
    t_idx = pl.program_id(1)
    ext = tile_t + 2 * HALO
    w_dtype = w_ref.dtype

    # Elementwise math stays in f32 (portable to v5e: no bf16 VPU there).
    cur = x_ref[0, 0].astype(jnp.float32)                      # (ext, Cp)

    # Hoisted boundary index: rows whose global time index falls outside
    # [0, t_valid) are zeroed after every conv — exactly torch's per-conv zero
    # padding at the sequence boundaries. One iota per grid step, not per conv.
    g = t_idx * tile_t - HALO + lax.broadcasted_iota(jnp.int32, (ext, 1), 0)

    def conv_same(v, layer, dilation, start):
        # "same" Conv1d on the shrinking window: output drops `dilation` rows
        # per side. K taps fused into a single MXU contraction via lane-concat;
        # the im2col operand is built directly in the weight dtype.
        lo = v.shape[0] - 2 * dilation
        vq = v.astype(w_dtype)
        cols = jnp.concatenate(
            [vq[k * dilation:k * dilation + lo, :] for k in range(KERNEL_SIZE)],
            axis=-1)                                            # (lo, K*Cp)
        y = jnp.dot(cols, w_ref[layer], preferred_element_type=jnp.float32)
        y = y + b_ref[layer:layer + 1, :].astype(jnp.float32)
        gv = g[start:start + lo]                                # (lo, 1)
        return jnp.where((gv >= 0) & (gv < t_valid), y, 0.0)

    off = 0                                  # halo rows consumed so far (per side)
    for i, d in enumerate(DILATIONS):
        xt = _leaky(cur, lrelu_slope)
        xt = conv_same(xt, 2 * i, d, off + d)              # convs1[i], dilation d
        xt = _leaky(xt, lrelu_slope)
        xt = conv_same(xt, 2 * i + 1, 1, off + d + 1)      # convs2[i], dilation 1
        off += d + 1
        cur = xt + cur[d + 1: cur.shape[0] - (d + 1), :]   # residual (cropped)

    # NOTE: the tap/residual/final crops start off 8-row sublane boundaries; if
    # bundle dumps still show vst co-saturating the MXU after the bf16-cols
    # change, switch to a mask-don't-crop scheme (fixed-length intermediates +
    # pltpu.roll) — kept as-is here since it is measurement-gated.
    extra = HALO - RF
    o_ref[0] = cur[extra:extra + tile_t, :].astype(o_ref.dtype)


def _vmem_limit_bytes(tile_t, cp, act_bytes, w_bytes, single_buffered_w):
    ext = tile_t + 2 * HALO
    wbuf = 1 if single_buffered_w else 2
    io_tiles = 2 * (ext + tile_t) * cp * act_bytes            # double-buffered in/out
    weights = wbuf * N_CONV * KERNEL_SIZE * cp * cp * w_bytes
    bias = wbuf * N_CONV * cp * 4
    temps = 4 * ext * cp * 4 + 2 * ext * KERNEL_SIZE * cp * max(w_bytes, 2)
    total = int(1.5 * (io_tiles + weights + bias + temps)) + (8 << 20)
    cap = 64 << 20                       # safe on every generation if query fails
    try:
        cap = int(pltpu.get_tpu_info().vmem_capacity_bytes) - (8 << 20)
    except Exception:
        pass
    return min(max(total, 32 << 20), cap)


def _buffered_ok():
    # Probe only for pipeline_mode/Buffered availability (narrow failure modes).
    try:
        pl.BlockSpec((8, 128), lambda i: (0, 0), pipeline_mode=pl.Buffered(1))
        return True
    except (TypeError, AttributeError):
        return False


_BUFFERED_OK = _buffered_ok()


def _pick_tile_t(B, T):
    """Production default: large tile (<=1024), but keep >=2 parallel grid units
    so both v7x TensorCores get work even when B == 1."""
    tt = min(1024, _round_up(T, 8))
    while B * pl.cdiv(_round_up(T, 8), tt) < 2 and tt > 8:
        tt = max(8, _round_up(tt // 2, 8))
    return tt


@functools.partial(jax.jit,
                   static_argnames=("tile_t", "lane_multiple", "single_buffered_w"))
def _resblock_run(x, w, b, *, tile_t, lane_multiple, single_buffered_w):
    B, T, C = x.shape
    cp = _round_up(C, lane_multiple)     # lane-dense channels
    tp = _round_up(T, tile_t)
    n_t = tp // tile_t
    ext = tile_t + 2 * HALO

    # One fused pre-pass: pad time (with halo) + channels, then build the
    # overlapping extended tiles with static slices so every kernel block
    # already carries its halo (no in-kernel halo assembly).
    x_halo = jnp.pad(x, ((0, 0), (HALO, HALO + tp - T), (0, cp - C)))
    xe = jnp.stack(
        [lax.dynamic_slice_in_dim(x_halo, t * tile_t, ext, axis=1)
         for t in range(n_t)], axis=1)                      # (B, n_t, ext, cp)

    # Weight slab per conv with rows ordered (k, cin) so the 3 taps contract in
    # a single dot; bias kept in f32.
    wq = jnp.pad(w, ((0, 0), (0, 0), (0, cp - C), (0, cp - C)))
    wq = wq.reshape(N_CONV, KERNEL_SIZE * cp, cp)
    bq = jnp.pad(b.astype(jnp.float32), ((0, 0), (0, cp - C)))

    kernel = functools.partial(resblock_kernel, tile_t=tile_t, t_valid=T,
                               lrelu_slope=LRELU_SLOPE)
    act_bytes = jnp.dtype(x.dtype).itemsize
    w_bytes = jnp.dtype(w.dtype).itemsize

    # Weights/bias never change across the grid: Buffered(1) skips their
    # double-buffering (halves weight VMEM at real widths — key on v7x).
    const_kw = {"pipeline_mode": pl.Buffered(1)} if single_buffered_w else {}

    cost = pl.CostEstimate(
        flops=2 * B * tp * N_CONV * KERNEL_SIZE * cp * cp,
        transcendentals=0,
        bytes_accessed=int(xe.size * act_bytes + B * tp * cp * act_bytes
                           + wq.size * w_bytes + bq.size * 4))

    out = pl.pallas_call(
        kernel,
        out_shape=jax.ShapeDtypeStruct((B, tp, cp), x.dtype),
        grid=(B, n_t),
        in_specs=[
            pl.BlockSpec((1, 1, ext, cp), lambda bb, tt: (bb, tt, 0, 0)),
            pl.BlockSpec((N_CONV, KERNEL_SIZE * cp, cp),
                         lambda bb, tt: (0, 0, 0), **const_kw),
            pl.BlockSpec((N_CONV, cp), lambda bb, tt: (0, 0), **const_kw),
        ],
        out_specs=pl.BlockSpec((1, tile_t, cp), lambda bb, tt: (bb, tt, 0)),
        compiler_params=pltpu.CompilerParams(
            dimension_semantics=("parallel", "parallel"),
            vmem_limit_bytes=_vmem_limit_bytes(tile_t, cp, act_bytes, w_bytes,
                                               single_buffered_w)),
        cost_estimate=cost,
    )(xe, wq, bq)
    return out[:, :T, :C]


def resblock_pallas(x, w, b, *, tile_t=None, lane_multiple=LANE):
    """HiFi-GAN ResBlock forward.

    x: (B, T, C); w: (N_CONV, K, Cin, Cout) with w[l,k,ci,co]==torch_w[l][co,ci,k]
    (weight_norm already folded); b: (N_CONV, C). Returns (B, T, C) in x.dtype.

    tile_t: time tile (multiple of 8); default auto-picks up to 1024 (use large
    tiles for real vocoder T). lane_multiple: channel padding granularity —
    pass 256 on v6e/v7x for widths such as 384 to keep the 256-wide MXU full.
    On v7x prefer bf16 x/w (the kernel keeps f32 accumulation internally).
    """
    B, T, C = x.shape
    assert w.shape == (N_CONV, KERNEL_SIZE, C, C) and b.shape == (N_CONV, C)
    if tile_t is None:
        tile_t = _pick_tile_t(B, T)
    assert tile_t % 8 == 0

    if not _BUFFERED_OK:
        return _resblock_run(x, w, b, tile_t=tile_t, lane_multiple=lane_multiple,
                             single_buffered_w=False)
    try:
        return _resblock_run(x, w, b, tile_t=tile_t, lane_multiple=lane_multiple,
                             single_buffered_w=True)
    except (NotImplementedError, pltpu.LoweringException):
        # Only the specific "pipeline_mode unsupported" failures fall back to
        # default (double-buffered) weight specs; anything else propagates.
        return _resblock_run(x, w, b, tile_t=tile_t, lane_multiple=lane_multiple,
                             single_buffered_w=False)


def resblock_ref(x_nlc, w, b):
    """Pure-JAX reference matching torch semantics (for verification)."""
    x = jnp.transpose(x_nlc, (0, 2, 1)).astype(jnp.float32)  # -> NCT
    w = w.astype(jnp.float32)
    b = b.astype(jnp.float32)

    def conv(x, wl, bl, d):
        pad = (KERNEL_SIZE - 1) * d // 2
        w_oih = jnp.transpose(wl, (2, 1, 0))   # (K,Cin,Cout) -> (Cout,Cin,K)
        y = lax.conv_general_dilated(x, w_oih, window_strides=(1,),
                                     padding=[(pad, pad)], rhs_dilation=(d,),
                                     dimension_numbers=("NCH", "OIH", "NCH"))
        return y + bl[None, :, None]

    for i, d in enumerate(DILATIONS):
        xt = jnp.where(x >= 0, x, LRELU_SLOPE * x)
        xt = conv(xt, w[2 * i], b[2 * i], d)
        xt = jnp.where(xt >= 0, xt, LRELU_SLOPE * xt)
        xt = conv(xt, w[2 * i + 1], b[2 * i + 1], 1)
        x = xt + x
    return jnp.transpose(x, (0, 2, 1))


if __name__ == "__main__":
    B, T, C = 2, 160, 32   # T deliberately not a multiple of the time tile

    key = jax.random.PRNGKey(0)
    kx, kw, kb = jax.random.split(key, 3)

    x = jax.random.normal(kx, (B, T, C), jnp.float32)
    # init_weights: normal(0, 0.01); weight_norm is folded into the effective
    # weight (synthetic deterministic init, no checkpoint load).
    w = 0.01 * jax.random.normal(kw, (N_CONV, KERNEL_SIZE, C, C), jnp.float32)
    bound = 1.0 / (C * KERNEL_SIZE) ** 0.5
    b = jax.random.uniform(kb, (N_CONV, C), jnp.float32, -bound, bound)

    ref = jax.block_until_ready(resblock_ref(x, w, b))

    # float32, small tile (tight correctness check of halo / boundary masking).
    out = jax.block_until_ready(resblock_pallas(x, w, b, tile_t=64))
    assert out.shape == (B, T, C)
    assert jnp.allclose(out, ref, atol=2e-3, rtol=2e-3), "f32 (tile_t=64) mismatch"

    # Auto-picked (production-style) tile.
    out_big = jax.block_until_ready(resblock_pallas(x, w, b))
    assert jnp.allclose(out_big, ref, atol=2e-3, rtol=2e-3), "f32 (auto tile) mismatch"

    # bf16 storage for activations/weights (v6e/v7x fast path; f32 accumulate).
    out_bf = jax.block_until_ready(
        resblock_pallas(x.astype(jnp.bfloat16), w.astype(jnp.bfloat16), b,
                        tile_t=64))
    ref_bf = resblock_ref(x.astype(jnp.bfloat16), w.astype(jnp.bfloat16), b)
    assert out_bf.dtype == jnp.bfloat16
    assert jnp.allclose(out_bf.astype(jnp.float32), ref_bf,
                        atol=3e-2, rtol=3e-2), "bf16 mismatch vs reference"

    print("KERNEL_OK")
</pallas_src>

<mosaic_0001>
module attributes {stable_mosaic.version = 11 : i64} {
  func.func @resblock_kernel(%arg0: i32, %arg1: i32, %arg2: memref<1x1x96x128xf32, #tpu.memory_space<vmem>>, %arg3: memref<6x384x128xf32, #tpu.memory_space<vmem>>, %arg4: memref<6x128xf32, #tpu.memory_space<vmem>>, %arg5: memref<1x64x128xf32, #tpu.memory_space<vmem>>) attributes {dimension_semantics = [#tpu.dimension_semantics<parallel>, #tpu.dimension_semantics<parallel>], iteration_bounds = array<i64: 2, 3>, scalar_prefetch = 0 : i64, scratch_operands = 0 : i64, tpu.core_type = #tpu.core_type<tc>, window_params = [{transform_indices = @transform_0, window_bounds = array<i64: 1, 1, 96, 128>}, {pipeline_mode = #tpu.pipeline_mode<synchronous>, transform_indices = @transform_1, window_bounds = array<i64: 6, 384, 128>}, {pipeline_mode = #tpu.pipeline_mode<synchronous>, transform_indices = @transform_2, window_bounds = array<i64: 6, 128>}, {transform_indices = @transform_3, window_bounds = array<i64: 1, 64, 128>}]} {
    %c0 = arith.constant 0 : index
    %c0_0 = arith.constant 0 : index
    %c0_1 = arith.constant 0 : index
    %c0_2 = arith.constant 0 : index
    %0 = vector.load %arg2[%c0, %c0_0, %c0_1, %c0_2] : memref<1x1x96x128xf32, #tpu.memory_space<vmem>>, vector<1x1x96x128xf32>
    %1 = vector.shape_cast %0 : vector<1x1x96x128xf32> to vector<96x128xf32>
    %c64_i32 = arith.constant 64 : i32
    %2 = arith.muli %arg1, %c64_i32 : i32
    %c16_i32 = arith.constant 16 : i32
    %3 = arith.subi %2, %c16_i32 : i32
    %4 = tpu.iota {dimensions = array<i32: 0>} : vector<96x1xi32>
    %5 = vector.broadcast %3 : i32 to vector<96x1xi32>
    %6 = arith.addi %5, %4 : vector<96x1xi32>
    %cst = arith.constant 0.000000e+00 : f32
    %7 = vector.broadcast %cst : f32 to vector<96x128xf32>
    %8 = arith.cmpf oge, %1, %7 : vector<96x128xf32>
    %cst_3 = arith.constant 1.000000e-01 : f32
    %9 = vector.broadcast %cst_3 : f32 to vector<96x128xf32>
    %10 = arith.mulf %9, %1 : vector<96x128xf32>
    %11 = arith.select %8, %1, %10 : vector<96x128xi1>, vector<96x128xf32>
    %12 = vector.extract_strided_slice %11 {offsets = [0, 0], sizes = [94, 128], strides = [1, 1]} : vector<96x128xf32> to vector<94x128xf32>
    %13 = vector.extract_strided_slice %11 {offsets = [1, 0], sizes = [94, 128], strides = [1, 1]} : vector<96x128xf32> to vector<94x128xf32>
    %14 = vector.extract_strided_slice %11 {offsets = [2, 0], sizes = [94, 128], strides = [1, 1]} : vector<96x128xf32> to vector<94x128xf32>
    %15 = tpu.concatenate %12, %13, %14 in 1 : vector<94x128xf32>, vector<94x128xf32>, vector<94x128xf32> -> vector<94x384xf32>
    %c0_4 = arith.constant 0 : index
    %c0_5 = arith.constant 0 : index
    %c0_6 = arith.constant 0 : index
    %16 = vector.load %arg3[%c0_4, %c0_5, %c0_6] : memref<6x384x128xf32, #tpu.memory_space<vmem>>, vector<1x384x128xf32>
    %17 = vector.shape_cast %16 : vector<1x384x128xf32> to vector<384x128xf32>
    %cst_7 = arith.constant dense<0.000000e+00> : vector<94x128xf32>
    %18 = tpu.matmul %15, %17, %cst_7 {dimension_numbers = #tpu.dot_dimension_numbers<[1], [0], [0], [1], [0, 0, 1, 1], [], []>} : vector<94x384xf32>, vector<384x128xf32>, vector<94x128xf32> -> vector<94x128xf32>
    %c0_8 = arith.constant 0 : index
    %c0_9 = arith.constant 0 : index
    %19 = vector.load %arg4[%c0_8, %c0_9] : memref<6x128xf32, #tpu.memory_space<vmem>>, vector<1x128xf32>
    %20 = vector.broadcast %19 : vector<1x128xf32> to vector<94x128xf32>
    %21 = arith.addf %18, %20 : vector<94x128xf32>
    %22 = vector.extract_strided_slice %6 {offsets = [1, 0], sizes = [94, 1], strides = [1, 1]} : vector<96x1xi32> to vector<94x1xi32>
    %c0_i32 = arith.constant 0 : i32
    %23 = vector.broadcast %c0_i32 : i32 to vector<94x1xi32>
    %24 = arith.cmpi sge, %22, %23 : vector<94x1xi32>
    %c160_i32 = arith.constant 160 : i32
    %25 = vector.broadcast %c160_i32 : i32 to vector<94x1xi32>
    %26 = arith.cmpi slt, %22, %25 : vector<94x1xi32>
    %27 = arith.andi %24, %26 : vector<94x1xi1>
    %cst_10 = arith.constant 0.000000e+00 : f32
    %28 = vector.shape_cast %27 : vector<94x1xi1> to vector<94x1xi1>
    %29 = vector.broadcast %28 : vector<94x1xi1> to vector<94x128xi1>
    %30 = vector.broadcast %cst_10 : f32 to vector<94x128xf32>
    %31 = arith.select %29, %21, %30 : vector<94x128xi1>, vector<94x128xf32>
    %cst_11 = arith.constant 0.000000e+00 : f32
    %32 = vector.broadcast %cst_11 : f32 to vector<94x128xf32>
    %33 = arith.cmpf oge, %31, %32 : vector<94x128xf32>
    %cst_12 = arith.constant 1.000000e-01 : f32
    %34 = vector.broadcast %cst_12 : f32 to vector<94x128xf32>
    %35 = arith.mulf %34, %31 : vector<94x128xf32>
    %36 = arith.select %33, %31, %35 : vector<94x128xi1>, vector<94x128xf32>
    %37 = vector.extract_strided_slice %36 {offsets = [0, 0], sizes = [92, 128], strides = [1, 1]} : vector<94x128xf32> to vector<92x128xf32>
    %38 = vector.extract_strided_slice %36 {offsets = [1, 0], sizes = [92, 128], strides = [1, 1]} : vector<94x128xf32> to vector<92x128xf32>
    %39 = vector.extract_strided_slice %36 {offsets = [2, 0], sizes = [92, 128], strides = [1, 1]} : vector<94x128xf32> to vector<92x128xf32>
    %40 = tpu.concatenate %37, %38, %39 in 1 : vector<92x128xf32>, vector<92x128xf32>, vector<92x128xf32> -> vector<92x384xf32>
    %c1 = arith.constant 1 : index
    %c0_13 = arith.constant 0 : index
    %c0_14 = arith.constant 0 : index
    %41 = vector.load %arg3[%c1, %c0_13, %c0_14] : memref<6x384x128xf32, #tpu.memory_space<vmem>>, vector<1x384x128xf32>
    %42 = vector.shape_cast %41 : vector<1x384x128xf32> to vector<384x128xf32>
    %cst_15 = arith.constant dense<0.000000e+00> : vector<92x128xf32>
    %43 = tpu.matmul %40, %42, %cst_15 {dimension_numbers = #tpu.dot_dimension_numbers<[1], [0], [0], [1], [0, 0, 1, 1], [], []>} : vector<92x384xf32>, vector<384x128xf32>, vector<92x128xf32> -> vector<92x128xf32>
    %c1_16 = arith.constant 1 : index
    %c0_17 = arith.constant 0 : index
    %44 = vector.load %arg4[%c1_16, %c0_17] : memref<6x128xf32, #tpu.memory_space<vmem>>, vector<1x128xf32>
    %45 = vector.broadcast %44 : vector<1x128xf32> to vector<92x128xf32>
    %46 = arith.addf %43, %45 : vector<92x128xf32>
    %47 = vector.extract_strided_slice %6 {offsets = [2, 0], sizes = [92, 1], strides = [1, 1]} : vector<96x1xi32> to vector<92x1xi32>
    %c0_i32_18 = arith.constant 0 : i32
    %48 = vector.broadcast %c0_i32_18 : i32 to vector<92x1xi32>
    %49 = arith.cmpi sge, %47, %48 : vector<92x1xi32>
    %c160_i32_19 = arith.constant 160 : i32
    %50 = vector.broadcast %c160_i32_19 : i32 to vector<92x1xi32>
    %51 = arith.cmpi slt, %47, %50 : vector<92x1xi32>
    %52 = arith.andi %49, %51 : vector<92x1xi1>
    %cst_20 = arith.constant 0.000000e+00 : f32
    %53 = vector.shape_cast %52 : vector<92x1xi1> to vector<92x1xi1>
    %54 = vector.broadcast %53 : vector<92x1xi1> to vector<92x128xi1>
    %55 = vector.broadcast %cst_20 : f32 to vector<92x128xf32>
    %56 = arith.select %54, %46, %55 : vector<92x128xi1>, vector<92x128xf32>
    %57 = vector.extract_strided_slice %1 {offsets = [2, 0], sizes = [92, 128], strides = [1, 1]} : vector<96x128xf32> to vector<92x128xf32>
    %58 = arith.addf %56, %57 : vector<92x128xf32>
    %cst_21 = arith.constant 0.000000e+00 : f32
    %59 = vector.broadcast %cst_21 : f32 to vector<92x128xf32>
    %60 = arith.cmpf oge, %58, %59 : vector<92x128xf32>
    %cst_22 = arith.constant 1.000000e-01 : f32
    %61 = vector.broadcast %cst_22 : f32 to vector<92x128xf32>
    %62 = arith.mulf %61, %58 : vector<92x128xf32>
    %63 = arith.select %60, %58, %62 : vector<92x128xi1>, vector<92x128xf32>
    %64 = vector.extract_strided_slice %63 {offsets = [0, 0], sizes = [86, 128], strides = [1, 1]} : vector<92x128xf32> to vector<86x128xf32>
    %65 = vector.extract_strided_slice %63 {offsets = [3, 0], sizes = [86, 128], strides = [1, 1]} : vector<92x128xf32> to vector<86x128xf32>
    %66 = vector.extract_strided_slice %63 {offsets = [6, 0], sizes = [86, 128], strides = [1, 1]} : vector<92x128xf32> to vector<86x128xf32>
    %67 = tpu.concatenate %64, %65, %66 in 1 : vector<86x128xf32>, vector<86x128xf32>, vector<86x128xf32> -> vector<86x384xf32>
    %c2 = arith.constant 2 : index
    %c0_23 = arith.constant 0 : index
    %c0_24 = arith.constant 0 : index
    %68 = vector.load %arg3[%c2, %c0_23, %c0_24] : memref<6x384x128xf32, #tpu.memory_space<vmem>>, vector<1x384x128xf32>
    %69 = vector.shape_cast %68 : vector<1x384x128xf32> to vector<384x128xf32>
    %cst_25 = arith.constant dense<0.000000e+00> : vector<86x128xf32>
    %70 = tpu.matmul %67, %69, %cst_25 {dimension_numbers = #tpu.dot_dimension_numbers<[1], [0], [0], [1], [0, 0, 1, 1], [], []>} : vector<86x384xf32>, vector<384x128xf32>, vector<86x128xf32> -> vector<86x128xf32>
    %c2_26 = arith.constant 2 : index
    %c0_27 = arith.constant 0 : index
    %71 = vector.load %arg4[%c2_26, %c0_27] : memref<6x128xf32, #tpu.memory_space<vmem>>, vector<1x128xf32>
    %72 = vector.broadcast %71 : vector<1x128xf32> to vector<86x128xf32>
    %73 = arith.addf %70, %72 : vector<86x128xf32>
    %74 = vector.extract_strided_slice %6 {offsets = [5, 0], sizes = [86, 1], strides = [1, 1]} : vector<96x1xi32> to vector<86x1xi32>
    %c0_i32_28 = arith.constant 0 : i32
    %75 = vector.broadcast %c0_i32_28 : i32 to vector<86x1xi32>
    %76 = arith.cmpi sge, %74, %75 : vector<86x1xi32>
    %c160_i32_29 = arith.constant 160 : i32
    %77 = vector.broadcast %c160_i32_29 : i32 to vector<86x1xi32>
    %78 = arith.cmpi slt, %74, %77 : vector<86x1xi32>
    %79 = arith.andi %76, %78 : vector<86x1xi1>
    %cst_30 = arith.constant 0.000000e+00 : f32
    %80 = vector.shape_cast %79 : vector<86x1xi1> to vector<86x1xi1>
    %81 = vector.broadcast %80 : vector<86x1xi1> to vector<86x128xi1>
    %82 = vector.broadcast %cst_30 : f32 to vector<86x128xf32>
    %83 = arith.select %81, %73, %82 : vector<86x128xi1>, vector<86x128xf32>
    %cst_31 = arith.constant 0.000000e+00 : f32
    %84 = vector.broadcast %cst_31 : f32 to vector<86x128xf32>
    %85 = arith.cmpf oge, %83, %84 : vector<86x128xf32>
    %cst_32 = arith.constant 1.000000e-01 : f32
    %86 = vector.broadcast %cst_32 : f32 to vector<86x128xf32>
    %87 = arith.mulf %86, %83 : vector<86x128xf32>
    %88 = arith.select %85, %83, %87 : vector<86x128xi1>, vector<86x128xf32>
    %89 = vector.extract_strided_slice %88 {offsets = [0, 0], sizes = [84, 128], strides = [1, 1]} : vector<86x128xf32> to vector<84x128xf32>
    %90 = vector.extract_strided_slice %88 {offsets = [1, 0], sizes = [84, 128], strides = [1, 1]} : vector<86x128xf32> to vector<84x128xf32>
    %91 = vector.extract_strided_slice %88 {offsets = [2, 0], sizes = [84, 128], strides = [1, 1]} : vector<86x128xf32> to vector<84x128xf32>
    %92 = tpu.concatenate %89, %90, %91 in 1 : vector<84x128xf32>, vector<84x128xf32>, vector<84x128xf32> -> vector<84x384xf32>
    %c3 = arith.constant 3 : index
    %c0_33 = arith.constant 0 : index
    %c0_34 = arith.constant 0 : index
    %93 = vector.load %arg3[%c3, %c0_33, %c0_34] : memref<6x384x128xf32, #tpu.memory_space<vmem>>, vector<1x384x128xf32>
    %94 = vector.shape_cast %93 : vector<1x384x128xf32> to vector<384x128xf32>
    %cst_35 = arith.constant dense<0.000000e+00> : vector<84x128xf32>
    %95 = tpu.matmul %92, %94, %cst_35 {dimension_numbers = #tpu.dot_dimension_numbers<[1], [0], [0], [1], [0, 0, 1, 1], [], []>} : vector<84x384xf32>, vector<384x128xf32>, vector<84x128xf32> -> vector<84x128xf32>
    %c3_36 = arith.constant 3 : index
    %c0_37 = arith.constant 0 : index
    %96 = vector.load %arg4[%c3_36, %c0_37] : memref<6x128xf32, #tpu.memory_space<vmem>>, vector<1x128xf32>
    %97 = vector.broadcast %96 : vector<1x128xf32> to vector<84x128xf32>
    %98 = arith.addf %95, %97 : vector<84x128xf32>
    %99 = vector.extract_strided_slice %6 {offsets = [6, 0], sizes = [84, 1], strides = [1, 1]} : vector<96x1xi32> to vector<84x1xi32>
    %c0_i32_38 = arith.constant 0 : i32
    %100 = vector.broadcast %c0_i32_38 : i32 to vector<84x1xi32>
    %101 = arith.cmpi sge, %99, %100 : vector<84x1xi32>
    %c160_i32_39 = arith.constant 160 : i32
    %102 = vector.broadcast %c160_i32_39 : i32 to vector<84x1xi32>
    %103 = arith.cmpi slt, %99, %102 : vector<84x1xi32>
    %104 = arith.andi %101, %103 : vector<84x1xi1>
    %cst_40 = arith.constant 0.000000e+00 : f32
    %105 = vector.shape_cast %104 : vector<84x1xi1> to vector<84x1xi1>
    %106 = vector.broadcast %105 : vector<84x1xi1> to vector<84x128xi1>
    %107 = vector.broadcast %cst_40 : f32 to vector<84x128xf32>
    %108 = arith.select %106, %98, %107 : vector<84x128xi1>, vector<84x128xf32>
    %109 = vector.extract_strided_slice %58 {offsets = [4, 0], sizes = [84, 128], strides = [1, 1]} : vector<92x128xf32> to vector<84x128xf32>
    %110 = arith.addf %108, %109 : vector<84x128xf32>
    %cst_41 = arith.constant 0.000000e+00 : f32
    %111 = vector.broadcast %cst_41 : f32 to vector<84x128xf32>
    %112 = arith.cmpf oge, %110, %111 : vector<84x128xf32>
    %cst_42 = arith.constant 1.000000e-01 : f32
    %113 = vector.broadcast %cst_42 : f32 to vector<84x128xf32>
    %114 = arith.mulf %113, %110 : vector<84x128xf32>
    %115 = arith.select %112, %110, %114 : vector<84x128xi1>, vector<84x128xf32>
    %116 = vector.extract_strided_slice %115 {offsets = [0, 0], sizes = [74, 128], strides = [1, 1]} : vector<84x128xf32> to vector<74x128xf32>
    %117 = vector.extract_strided_slice %115 {offsets = [5, 0], sizes = [74, 128], strides = [1, 1]} : vector<84x128xf32> to vector<74x128xf32>
    %118 = vector.extract_strided_slice %115 {offsets = [10, 0], sizes = [74, 128], strides = [1, 1]} : vector<84x128xf32> to vector<74x128xf32>
    %119 = tpu.concatenate %116, %117, %118 in 1 : vector<74x128xf32>, vector<74x128xf32>, vector<74x128xf32> -> vector<74x384xf32>
    %c4 = arith.constant 4 : index
    %c0_43 = arith.constant 0 : index
    %c0_44 = arith.constant 0 : index
    %120 = vector.load %arg3[%c4, %c0_43, %c0_44] : memref<6x384x128xf32, #tpu.memory_space<vmem>>, vector<1x384x128xf32>
    %121 = vector.shape_cast %120 : vector<1x384x128xf32> to vector<384x128xf32>
    %cst_45 = arith.constant dense<0.000000e+00> : vector<74x128xf32>
    %122 = tpu.matmul %119, %121, %cst_45 {dimension_numbers = #tpu.dot_dimension_numbers<[1], [0], [0], [1], [0, 0, 1, 1], [], []>} : vector<74x384xf32>, vector<384x128xf32>, vector<74x128xf32> -> vector<74x128xf32>
    %c4_46 = arith.constant 4 : index
    %c0_47 = arith.constant 0 : index
    %123 = vector.load %arg4[%c4_46, %c0_47] : memref<6x128xf32, #tpu.memory_space<vmem>>, vector<1x128xf32>
    %124 = vector.broadcast %123 : vector<1x128xf32> to vector<74x128xf32>
    %125 = arith.addf %122, %124 : vector<74x128xf32>
    %126 = vector.extract_strided_slice %6 {offsets = [11, 0], sizes = [74, 1], strides = [1, 1]} : vector<96x1xi32> to vector<74x1xi32>
    %c0_i32_48 = arith.constant 0 : i32
    %127 = vector.broadcast %c0_i32_48 : i32 to vector<74x1xi32>
    %128 = arith.cmpi sge, %126, %127 : vector<74x1xi32>
    %c160_i32_49 = arith.constant 160 : i32
    %129 = vector.broadcast %c160_i32_49 : i32 to vector<74x1xi32>
    %130 = arith.cmpi slt, %126, %129 : vector<74x1xi32>
    %131 = arith.andi %128, %130 : vector<74x1xi1>
    %cst_50 = arith.constant 0.000000e+00 : f32
    %132 = vector.shape_cast %131 : vector<74x1xi1> to vector<74x1xi1>
    %133 = vector.broadcast %132 : vector<74x1xi1> to vector<74x128xi1>
    %134 = vector.broadcast %cst_50 : f32 to vector<74x128xf32>
    %135 = arith.select %133, %125, %134 : vector<74x128xi1>, vector<74x128xf32>
    %cst_51 = arith.constant 0.000000e+00 : f32
    %136 = vector.broadcast %cst_51 : f32 to vector<74x128xf32>
    %137 = arith.cmpf oge, %135, %136 : vector<74x128xf32>
    %cst_52 = arith.constant 1.000000e-01 : f32
    %138 = vector.broadcast %cst_52 : f32 to vector<74x128xf32>
    %139 = arith.mulf %138, %135 : vector<74x128xf32>
    %140 = arith.select %137, %135, %139 : vector<74x128xi1>, vector<74x128xf32>
    %141 = vector.extract_strided_slice %140 {offsets = [0, 0], sizes = [72, 128], strides = [1, 1]} : vector<74x128xf32> to vector<72x128xf32>
    %142 = vector.extract_strided_slice %140 {offsets = [1, 0], sizes = [72, 128], strides = [1, 1]} : vector<74x128xf32> to vector<72x128xf32>
    %143 = vector.extract_strided_slice %140 {offsets = [2, 0], sizes = [72, 128], strides = [1, 1]} : vector<74x128xf32> to vector<72x128xf32>
    %144 = tpu.concatenate %141, %142, %143 in 1 : vector<72x128xf32>, vector<72x128xf32>, vector<72x128xf32> -> vector<72x384xf32>
    %c5 = arith.constant 5 : index
    %c0_53 = arith.constant 0 : index
    %c0_54 = arith.constant 0 : index
    %145 = vector.load %arg3[%c5, %c0_53, %c0_54] : memref<6x384x128xf32, #tpu.memory_space<vmem>>, vector<1x384x128xf32>
    %146 = vector.shape_cast %145 : vector<1x384x128xf32> to vector<384x128xf32>
    %cst_55 = arith.constant dense<0.000000e+00> : vector<72x128xf32>
    %147 = tpu.matmul %144, %146, %cst_55 {dimension_numbers = #tpu.dot_dimension_numbers<[1], [0], [0], [1], [0, 0, 1, 1], [], []>} : vector<72x384xf32>, vector<384x128xf32>, vector<72x128xf32> -> vector<72x128xf32>
    %c5_56 = arith.constant 5 : index
    %c0_57 = arith.constant 0 : index
    %148 = vector.load %arg4[%c5_56, %c0_57] : memref<6x128xf32, #tpu.memory_space<vmem>>, vector<1x128xf32>
    %149 = vector.broadcast %148 : vector<1x128xf32> to vector<72x128xf32>
    %150 = arith.addf %147, %149 : vector<72x128xf32>
    %151 = vector.extract_strided_slice %6 {offsets = [12, 0], sizes = [72, 1], strides = [1, 1]} : vector<96x1xi32> to vector<72x1xi32>
    %c0_i32_58 = arith.constant 0 : i32
    %152 = vector.broadcast %c0_i32_58 : i32 to vector<72x1xi32>
    %153 = arith.cmpi sge, %151, %152 : vector<72x1xi32>
    %c160_i32_59 = arith.constant 160 : i32
    %154 = vector.broadcast %c160_i32_59 : i32 to vector<72x1xi32>
    %155 = arith.cmpi slt, %151, %154 : vector<72x1xi32>
    %156 = arith.andi %153, %155 : vector<72x1xi1>
    %cst_60 = arith.constant 0.000000e+00 : f32
    %157 = vector.shape_cast %156 : vector<72x1xi1> to vector<72x1xi1>
    %158 = vector.broadcast %157 : vector<72x1xi1> to vector<72x128xi1>
    %159 = vector.broadcast %cst_60 : f32 to vector<72x128xf32>
    %160 = arith.select %158, %150, %159 : vector<72x128xi1>, vector<72x128xf32>
    %161 = vector.extract_strided_slice %110 {offsets = [6, 0], sizes = [72, 128], strides = [1, 1]} : vector<84x128xf32> to vector<72x128xf32>
    %162 = arith.addf %160, %161 : vector<72x128xf32>
    %163 = vector.extract_strided_slice %162 {offsets = [4, 0], sizes = [64, 128], strides = [1, 1]} : vector<72x128xf32> to vector<64x128xf32>
    %c0_61 = arith.constant 0 : index
    %c0_62 = arith.constant 0 : index
    %c0_63 = arith.constant 0 : index
    %164 = vector.load %arg5[%c0_61, %c0_62, %c0_63] : memref<1x64x128xf32, #tpu.memory_space<vmem>>, vector<1x64x128xf32>
    %165 = vector.shape_cast %164 : vector<1x64x128xf32> to vector<64x128xf32>
    %166 = vector.shape_cast %163 : vector<64x128xf32> to vector<1x64x128xf32>
    tpu.vector_store %arg5[%c0_61, %c0_62, %c0_63], %166 {strides = array<i32>} : memref<1x64x128xf32, #tpu.memory_space<vmem>>, vector<1x64x128xf32>,
    return
  }
  func.func @transform_0(%arg0: i32, %arg1: i32) -> (i32, i32, i32, i32) {
    %c0_i32 = arith.constant 0 : i32
    %c0_i32_0 = arith.constant 0 : i32
    %c0_i32_1 = arith.constant 0 : i32
    return %arg0, %arg1, %c0_i32, %c0_i32_0 : i32, i32, i32, i32
  }
  func.func @transform_1(%arg0: i32, %arg1: i32) -> (i32, i32, i32) {
    %c0_i32 = arith.constant 0 : i32
    %c0_i32_0 = arith.constant 0 : i32
    %c0_i32_1 = arith.constant 0 : i32
    %c0_i32_2 = arith.constant 0 : i32
    return %c0_i32, %c0_i32_0, %c0_i32_1 : i32, i32, i32
  }
  func.func @transform_2(%arg0: i32, %arg1: i32) -> (i32, i32) {
    %c0_i32 = arith.constant 0 : i32
    %c0_i32_0 = arith.constant 0 : i32
    %c0_i32_1 = arith.constant 0 : i32
    return %c0_i32, %c0_i32_0 : i32, i32
  }
  func.func @transform_3(%arg0: i32, %arg1: i32) -> (i32, i32, i32) {
    %c0_i32 = arith.constant 0 : i32
    %c0_i32_0 = arith.constant 0 : i32
    return %arg0, %arg1, %c0_i32 : i32, i32, i32
  }
}

</mosaic_0001>

<llo_original>
// kernel: _resblock_run.1
$region0: #{_resblock_run.1}
  #allocation0 [shape = 'u32[]', space=smem, size = 0x4, offset = 0x4, fixed_abs, tag = 'smem constant byte address 0x4 - core index']
  #allocation1 [shape = 'u32[72,128]{1,0:T(1,128)}', space=vmem, size = 0x9000, scoped, tag = 'internal scratch']
  %s0 = inlined_call_operand.vmem [shape: f32[2,3,96,128], index: 0, kind: input, shape index: {}]
  %s1 = inlined_call_operand.vmem [shape: f32[6,384,128], index: 1, kind: input, shape index: {}]
  %s2 = inlined_call_operand.vmem [shape: f32[6,128], index: 2, kind: input, shape index: {}]
  %s3 = inlined_call_operand.vmem [shape: f32[2,192,128], index: 3, kind: output, shape index: {}]
  %s4 = sld [smem:[#allocation0]]
  $region45: #{_resblock_run.1} parent=0
    _
  %s6 = ssub.s32 1, %s4
  %s7 = scalar_select 0, %s6, %s4
  loop: start=0, step=1, limit=8
  $region2: #{_resblock_run.1} parent=0 // loop_pre_header
    _
  $region3: #{_resblock_run.1} parent=0 // loop_header
    %s9 = sphi 0, %s13
    %p10 = scmp.ge.s32.totalorder %s9, 8
    %s16 = sphi 0, %s28
    %s17 = sphi 0, %s24
    %s18 = sphi 0, %s16
    %s19 = sphi 0, %s17
    %s20 = sphi 0, %s18
    %s21 = sphi 0, %s19
    %s33 = sphi 0, %s35
    %s36 = sphi 0, %s33
    %s37 = sphi 0, %s36
    %s53 = sphi 0, %s37
    %s57 = sphi 0, %s57
    %s59 = sphi 0, %s57
    %s60 = sphi 0, %s59
    %s74 = sphi 0, %s60
    %s78 = sphi 0, %s78
    %s80 = sphi 0, %s78
    %s81 = sphi 0, %s80
    %s95 = sphi 0, %s81
    %s103 = sphi 0, %s105
    %s106 = sphi 0, %s103
    %s107 = sphi 0, %s106
    %s123 = sphi 0, %s107
  $region4: #{_resblock_run.1} parent=0 // loop_header_branch
    %12 = sbr.rel (%p10) target = $region8
  $region5: #{_resblock_run.1} parent=0 // loop_body
    %s14 = ssub.s32 %s9, 1
    %s15 = ssub.s32 %s9, 2
    %s22 = sadd.s32 1, %s17
    %p23 = scmp.ge.s32.totalorder %s22, 3
    %s24 = scalar_select %p23, 0, %s22
    %s25 = sadd.s32 1, %s16
    %s26 = scalar_select %p23, %s25, %s16
    %p27 = scmp.ge.s32.totalorder %s26, 2
    %s28 = scalar_select %p27, 0, %s26
    %s29 = ssub.s32 %s16, %s28
    %s30 = ssub.s32 %s17, %s24
    %s31 = sor.u32 %s29, %s30
    %p32 = scmp.eq.s32.totalorder %s31, 0
    %s34 = sadd.s32 %s33, 1
    %s35 = scalar_select %p32, %s33, %s34
    %p38 = pneg %p32
    %p39 = scmp.eq.s32.totalorder %s9, 5
    %p40 = por %p38, %p39
    %p41 = scmp.ne.s32.totalorder %s33, %s36
    %p42 = scmp.eq.s32.totalorder %s9, 0
    %p43 = por %p41, %p42
    %p44 = scmp.ne.s32.totalorder %s33, %s36
    %p45 = scmp.eq.s32.totalorder %s14, 5
    %p46 = por %p44, %p45
    %p47 = scmp.ne.s32.totalorder %s36, %s37
    %p48 = scmp.eq.s32.totalorder %s14, 0
    %p49 = por %p47, %p48
    %p50 = scmp.ne.s32.totalorder %s36, %s37
    %p51 = scmp.eq.s32.totalorder %s15, 5
    %p52 = por %p50, %p51
    %p54 = scmp.ne.s32.totalorder %s37, %s53
    %p55 = scmp.eq.s32.totalorder %s15, 0
    %p56 = por %p54, %p55
    %s58 = sadd.s32 %s57, 1
    %p61 = scmp.eq.s32.totalorder %s9, 5
    %p62 = scmp.ne.s32.totalorder %s57, %s59
    %p63 = scmp.eq.s32.totalorder %s9, 0
    %p64 = por %p62, %p63
    %p65 = scmp.ne.s32.totalorder %s57, %s59
    %p66 = scmp.eq.s32.totalorder %s14, 5
    %p67 = por %p65, %p66
    %p68 = scmp.ne.s32.totalorder %s59, %s60
    %p69 = scmp.eq.s32.totalorder %s14, 0
    %p70 = por %p68, %p69
    %p71 = scmp.ne.s32.totalorder %s59, %s60
    %p72 = scmp.eq.s32.totalorder %s15, 5
    %p73 = por %p71, %p72
    %p75 = scmp.ne.s32.totalorder %s60, %s74
    %p76 = scmp.eq.s32.totalorder %s15, 0
    %p77 = por %p75, %p76
    %s79 = sadd.s32 %s78, 1
    %p82 = scmp.eq.s32.totalorder %s9, 5
    %p83 = scmp.ne.s32.totalorder %s78, %s80
    %p84 = scmp.eq.s32.totalorder %s9, 0
    %p85 = por %p83, %p84
    %p86 = scmp.ne.s32.totalorder %s78, %s80
    %p87 = scmp.eq.s32.totalorder %s14, 5
    %p88 = por %p86, %p87
    %p89 = scmp.ne.s32.totalorder %s80, %s81
    %p90 = scmp.eq.s32.totalorder %s14, 0
    %p91 = por %p89, %p90
    %p92 = scmp.ne.s32.totalorder %s80, %s81
    %p93 = scmp.eq.s32.totalorder %s15, 5
    %p94 = por %p92, %p93
    %p96 = scmp.ne.s32.totalorder %s81, %s95
    %p97 = scmp.eq.s32.totalorder %s15, 0
    %p98 = por %p96, %p97
    %s99 = ssub.s32 %s16, %s28
    %s100 = ssub.s32 %s17, %s24
    %s101 = sor.u32 %s99, %s100
    %p102 = scmp.eq.s32.totalorder %s101, 0
    %s104 = sadd.s32 %s103, 1
    %s105 = scalar_select %p102, %s103, %s104
    %p108 = pneg %p102
    %p109 = scmp.eq.s32.totalorder %s9, 5
    %p110 = por %p108, %p109
    %p111 = scmp.ne.s32.totalorder %s103, %s106
    %p112 = scmp.eq.s32.totalorder %s9, 0
    %p113 = por %p111, %p112
    %p114 = scmp.ne.s32.totalorder %s103, %s106
    %p115 = scmp.eq.s32.totalorder %s14, 5
    %p116 = por %p114, %p115
    %p117 = scmp.ne.s32.totalorder %s106, %s107
    %p118 = scmp.eq.s32.totalorder %s14, 0
    %p119 = por %p117, %p118
    %p120 = scmp.ne.s32.totalorder %s106, %s107
    %p121 = scmp.eq.s32.totalorder %s15, 5
    %p122 = por %p120, %p121
    %p124 = scmp.ne.s32.totalorder %s107, %s123
    %p125 = scmp.eq.s32.totalorder %s15, 0
    %p126 = por %p124, %p125
    %p127 = scmp.le.s32.totalorder 1, %s9
    %p128 = scmp.lt.s32.totalorder %s9, 7
    %p129 = pnand %p127, %p128
    %p130 = pneg %p129
    // Predicated region
    $region9: #{_resblock_run.1} parent=5 // pred_check
      _
    $region10: #{_resblock_run.1} parent=5 // pred_check_branch
      %132 = sbr.rel (%p129) target = $region12
    $region11: #{_resblock_run.1} parent=5 // pred_region
      %s133 = ssub.s32 %s9, 1
      // Predicated region
      $region13: #{_resblock_run.1} parent=11 // pred_check
        %p134 = pneg %p70
      $region14: #{_resblock_run.1} parent=11 // pred_check_branch
        %136 = sbr.rel (%p134) target = $region16
      $region15: #{_resblock_run.1} parent=11 // pred_region
        _
      $region16: #{_resblock_run.1} parent=11 // pred_fallthru
        _
      // Predicated region
      $region17: #{_resblock_run.1} parent=11 // pred_check
        %p137 = pneg %p91
      $region18: #{_resblock_run.1} parent=11 // pred_check_branch
        %139 = sbr.rel (%p137) target = $region20
      $region19: #{_resblock_run.1} parent=11 // pred_region
        _
      $region20: #{_resblock_run.1} parent=11 // pred_fallthru
        _
    $region12: #{_resblock_run.1} parent=5 // pred_fallthru
      _
    %p140 = scmp.lt.s32.totalorder %s9, 6
    // Predicated region
    $region21: #{_resblock_run.1} parent=5 // pred_check
      %p141 = pneg %p140
    $region22: #{_resblock_run.1} parent=5 // pred_check_branch
      %143 = sbr.rel (%p141) target = $region24
    $region23: #{_resblock_run.1} parent=5 // pred_region
      // Predicated region
      $region25: #{_resblock_run.1} parent=23 // pred_check
        %p144 = pneg %p43
      $region26: #{_resblock_run.1} parent=23 // pred_check_branch
        %146 = sbr.rel (%p144) target = $region28
      $region27: #{_resblock_run.1} parent=23 // pred_region
        %p147 = scmp.lt.s32.totalorder %s16, 1
        %s148 = scalar_select %p147, %s16, 1
        %p149 = scmp.lt.s32.totalorder %s17, 2
        %s150 = scalar_select %p149, %s17, 2
        %s151 = smul.addr %s150, 12
        %s152 = smul.addr %s148, 36
        %s153 = sadd.s32 %s151, %s152
        %s154 = smul.addr %s153, 8
        %s155 = scalar_lea.vmem %s0, %s154
      $region28: #{_resblock_run.1} parent=23 // pred_fallthru
        _
    $region24: #{_resblock_run.1} parent=5 // pred_fallthru
      _
    %p156 = scmp.le.s32.totalorder 1, %s9
    %p157 = scmp.lt.s32.totalorder %s9, 7
    %p158 = pnand %p156, %p157
    %p159 = pneg %p158
    // Predicated region
    $region29: #{_resblock_run.1} parent=5 // pred_check
      _
    $region30: #{_resblock_run.1} parent=5 // pred_check_branch
      %161 = sbr.rel (%p158) target = $region32
    $region31: #{_resblock_run.1} parent=5 // pred_region
      %s162 = ssub.s32 %s9, 1
      %p163 = scmp.lt.s32.totalorder %s18, 1
      %s164 = scalar_select %p163, %s18, 1
      %p165 = scmp.lt.s32.totalorder %s19, 2
      %s166 = scalar_select %p165, %s19, 2
      %s167 = smul.addr %s166, 12
      %s168 = smul.addr %s164, 36
      %s169 = sadd.s32 %s167, %s168
      %s170 = smul.addr %s169, 8
      %s171 = scalar_lea.vmem %s0, %s170
      %p172 = pneg %p49
      %p173 = pneg %p46
      %p174 = pneg %p70
      %p175 = pneg %p67
      %p176 = pneg %p91
      %p177 = pneg %p88
      %p178 = pneg %p119
      %p179 = pneg %p116
      %s180 = smul.u32 8, %s19
      %p181 = scmp.lt.s32.totalorder %s18, 1
      %s182 = scalar_select %p181, %s18, 1
      %p183 = scmp.lt.s32.totalorder %s180, 23
      %s184 = scalar_select %p183, %s180, 23
      %s185 = smul.addr %s182, 24
      %s186 = sadd.s32 %s184, %s185
      %s187 = smul.addr %s186, 8
      %s188 = scalar_lea.vmem %s3, %s187
      %p189 = scmp.lt.s32.totalorder %s18, 1
      %s190 = scalar_select %p189, %s18, 1
      %p191 = scmp.lt.s32.totalorder %s19, 2
      %s192 = scalar_select %p191, %s19, 2
      %s193 = smul.addr %s192, 12
      %s194 = smul.addr %s190, 36
      %s195 = sadd.s32 %s193, %s194
      %s196 = smul.addr %s195, 8
      %s197 = scalar_lea.vmem %s0, %s196
      %s198 = smul.u32 8, %s19
      %p199 = scmp.lt.s32.totalorder %s18, 1
      %s200 = scalar_select %p199, %s18, 1
      %p201 = scmp.lt.s32.totalorder %s198, 23
      %s202 = scalar_select %p201, %s198, 23
      %s203 = smul.addr %s200, 24
      %s204 = sadd.s32 %s202, %s203
      %s205 = smul.addr %s204, 8
      %s206 = scalar_lea.vmem %s3, %s205
      %s207 = smul.u32 8, %s19
      %v208 = vld [vmem:[%s197] sm:$0xff]
      %v209 = vld [vmem:[%s197 + $0x8] sm:$0xff]
      %v210 = vld [vmem:[%s197 + $0x10] sm:$0xff]
      %v211 = vld [vmem:[%s197 + $0x18] sm:$0xff]
      %v212 = vld [vmem:[%s197 + $0x20] sm:$0xff]
      %v213 = vld [vmem:[%s197 + $0x28] sm:$0xff]
      %v214 = vld [vmem:[%s197 + $0x30] sm:$0xff]
      %v215 = vld [vmem:[%s197 + $0x38] sm:$0xff]
      %v216 = vld [vmem:[%s197 + $0x40] sm:$0xff]
      %v217 = vld [vmem:[%s197 + $0x48] sm:$0xff]
      %v218 = vld [vmem:[%s197 + $0x50] sm:$0xff]
      %v219 = vld [vmem:[%s197 + $0x58] sm:$0xff]
      %s220 = smul.u32 %s19, 64
      %s221 = ssub.s32 %s220, 16
      %v222 = vlaneseq
      %v223 = vshrl.u32 %v222, 7
      %v224 = vadd.s32 %v223, 8
      %v225 = vadd.s32 %v223, 16
      %v226 = vadd.s32 %v223, 24
      %v227 = vadd.s32 %v223, 32
      %v228 = vadd.s32 %v223, 40
      %v229 = vadd.s32 %v223, 48
      %v230 = vadd.s32 %v223, 56
      %v231 = vadd.s32 %v223, 64
      %v232 = vadd.s32 %v223, 72
      %v233 = vadd.s32 %v223, 80
      %v234 = vadd.s32 %v223, 88
      %v235 = vstv %s221
      %v236 = vadd.s32 %v235, %v223
      %v237 = vadd.s32 %v235, %v224
      %v238 = vadd.s32 %v235, %v225
      %v239 = vadd.s32 %v235, %v226
      %v240 = vadd.s32 %v235, %v227
      %v241 = vadd.s32 %v235, %v228
      %v242 = vadd.s32 %v235, %v229
      %v243 = vadd.s32 %v235, %v230
      %v244 = vadd.s32 %v235, %v231
      %v245 = vadd.s32 %v235, %v232
      %v246 = vadd.s32 %v235, %v233
      %v247 = vadd.s32 %v235, %v234
      %vm248 = vcmp.ge.f32.partialorder %v208, 0.0
      %vm249 = vcmp.ge.f32.partialorder %v209, 0.0
      %vm250 = vcmp.ge.f32.partialorder %v210, 0.0
      %vm251 = vcmp.ge.f32.partialorder %v211, 0.0
      %vm252 = vcmp.ge.f32.partialorder %v212, 0.0
      %vm253 = vcmp.ge.f32.partialorder %v213, 0.0
      %vm254 = vcmp.ge.f32.partialorder %v214, 0.0
      %vm255 = vcmp.ge.f32.partialorder %v215, 0.0
      %vm256 = vcmp.ge.f32.partialorder %v216, 0.0
      %vm257 = vcmp.ge.f32.partialorder %v217, 0.0
      %vm258 = vcmp.ge.f32.partialorder %v218, 0.0
      %vm259 = vcmp.ge.f32.partialorder %v219, 0.0
      %v260 = vmul.f32 %v208, 0.1
      %v261 = vmul.f32 %v209, 0.1
      %v262 = vmul.f32 %v210, 0.1
      %v263 = vmul.f32 %v211, 0.1
      %v264 = vmul.f32 %v212, 0.1
      %v265 = vmul.f32 %v213, 0.1
      %v266 = vmul.f32 %v214, 0.1
      %v267 = vmul.f32 %v215, 0.1
      %v268 = vmul.f32 %v216, 0.1
      %v269 = vmul.f32 %v217, 0.1
      %v270 = vmul.f32 %v218, 0.1
      %v271 = vmul.f32 %v219, 0.1
      %v272 = vsel %vm248, %v208, %v260
      %v273 = vsel %vm249, %v209, %v261
      %v274 = vsel %vm250, %v210, %v262
      %v275 = vsel %vm251, %v211, %v263
      %v276 = vsel %vm252, %v212, %v264
      %v277 = vsel %vm253, %v213, %v265
      %v278 = vsel %vm254, %v214, %v266
      %v279 = vsel %vm255, %v215, %v267
      %v280 = vsel %vm256, %v216, %v268
      %v281 = vsel %vm257, %v217, %v269
      %v282 = vsel %vm258, %v218, %v270
      %v283 = vsel %vm259, %v219, %v271
      %vm296 = vcmask 1046528
      %v297 = vrot.slane %v272, 1
      %v298 = vrot.slane %v273, 1
      %v299 = vsel %vm296, %v297, %v298
      %v300 = vrot.slane %v274, 1
      %v301 = vsel %vm296, %v298, %v300
      %v302 = vrot.slane %v275, 1
      %v303 = vsel %vm296, %v300, %v302
      %v304 = vrot.slane %v276, 1
      %v305 = vsel %vm296, %v302, %v304
      %v306 = vrot.slane %v277, 1
      %v307 = vsel %vm296, %v304, %v306
      %v308 = vrot.slane %v278, 1
      %v309 = vsel %vm296, %v306, %v308
      %v310 = vrot.slane %v279, 1
      %v311 = vsel %vm296, %v308, %v310
      %v312 = vrot.slane %v280, 1
      %v313 = vsel %vm296, %v310, %v312
      %v314 = vrot.slane %v281, 1
      %v315 = vsel %vm296, %v312, %v314
      %v316 = vrot.slane %v282, 1
      %v317 = vsel %vm296, %v314, %v316
      %v318 = vrot.slane %v283, 1
      %v319 = vsel %vm296, %v316, %v318
      %vm332 = vcmask 1045504
      %v333 = vrot.slane %v272, 2
      %v334 = vrot.slane %v273, 2
      %v335 = vsel %vm332, %v333, %v334
      %v336 = vrot.slane %v274, 2
      %v337 = vsel %vm332, %v334, %v336
      %v338 = vrot.slane %v275, 2
      %v339 = vsel %vm332, %v336, %v338
      %v340 = vrot.slane %v276, 2
      %v341 = vsel %vm332, %v338, %v340
      %v342 = vrot.slane %v277, 2
      %v343 = vsel %vm332, %v340, %v342
      %v344 = vrot.slane %v278, 2
      %v345 = vsel %vm332, %v342, %v344
      %v346 = vrot.slane %v279, 2
      %v347 = vsel %vm332, %v344, %v346
      %v348 = vrot.slane %v280, 2
      %v349 = vsel %vm332, %v346, %v348
      %v350 = vrot.slane %v281, 2
      %v351 = vsel %vm332, %v348, %v350
      %v352 = vrot.slane %v282, 2
      %v353 = vsel %vm332, %v350, %v352
      %v354 = vrot.slane %v283, 2
      %v355 = vsel %vm332, %v352, %v354
      %v368 = vld [vmem:[%s1] sm:$0xff]
      %v369 = vld [vmem:[%s1 + $0x8] sm:$0xff]
      %v370 = vld [vmem:[%s1 + $0x10] sm:$0xff]
      %v371 = vld [vmem:[%s1 + $0x18] sm:$0xff]
      %v372 = vld [vmem:[%s1 + $0x20] sm:$0xff]
      %v373 = vld [vmem:[%s1 + $0x28] sm:$0xff]
      %v374 = vld [vmem:[%s1 + $0x30] sm:$0xff]
      %v375 = vld [vmem:[%s1 + $0x38] sm:$0xff]
      %v376 = vld [vmem:[%s1 + $0x40] sm:$0xff]
      %v377 = vld [vmem:[%s1 + $0x48] sm:$0xff]
      %v378 = vld [vmem:[%s1 + $0x50] sm:$0xff]
      %v379 = vld [vmem:[%s1 + $0x58] sm:$0xff]
      %v380 = vld [vmem:[%s1 + $0x60] sm:$0xff]
      %v381 = vld [vmem:[%s1 + $0x68] sm:$0xff]
      %v382 = vld [vmem:[%s1 + $0x70] sm:$0xff]
      %v383 = vld [vmem:[%s1 + $0x78] sm:$0xff]
      %v384 = vld [vmem:[%s1 + $0x80] sm:$0xff]
      %v385 = vld [vmem:[%s1 + $0x88] sm:$0xff]
      %v386 = vld [vmem:[%s1 + $0x90] sm:$0xff]
      %v387 = vld [vmem:[%s1 + $0x98] sm:$0xff]
      %v388 = vld [vmem:[%s1 + $0xa0] sm:$0xff]
      %v389 = vld [vmem:[%s1 + $0xa8] sm:$0xff]
      %v390 = vld [vmem:[%s1 + $0xb0] sm:$0xff]
      %v391 = vld [vmem:[%s1 + $0xb8] sm:$0xff]
      %v392 = vld [vmem:[%s1 + $0xc0] sm:$0xff]
      %v393 = vld [vmem:[%s1 + $0xc8] sm:$0xff]
      %v394 = vld [vmem:[%s1 + $0xd0] sm:$0xff]
      %v395 = vld [vmem:[%s1 + $0xd8] sm:$0xff]
      %v396 = vld [vmem:[%s1 + $0xe0] sm:$0xff]
      %v397 = vld [vmem:[%s1 + $0xe8] sm:$0xff]
      %v398 = vld [vmem:[%s1 + $0xf0] sm:$0xff]
      %v399 = vld [vmem:[%s1 + $0xf8] sm:$0xff]
      %v400 = vld [vmem:[%s1 + $0x100] sm:$0xff]
      %v401 = vld [vmem:[%s1 + $0x108] sm:$0xff]
      %v402 = vld [vmem:[%s1 + $0x110] sm:$0xff]
      %v403 = vld [vmem:[%s1 + $0x118] sm:$0xff]
      %v404 = vld [vmem:[%s1 + $0x120] sm:$0xff]
      %v405 = vld [vmem:[%s1 + $0x128] sm:$0xff]
      %v406 = vld [vmem:[%s1 + $0x130] sm:$0xff]
      %v407 = vld [vmem:[%s1 + $0x138] sm:$0xff]
      %v408 = vld [vmem:[%s1 + $0x140] sm:$0xff]
      %v409 = vld [vmem:[%s1 + $0x148] sm:$0xff]
      %v410 = vld [vmem:[%s1 + $0x150] sm:$0xff]
      %v411 = vld [vmem:[%s1 + $0x158] sm:$0xff]
      %v412 = vld [vmem:[%s1 + $0x160] sm:$0xff]
      %v413 = vld [vmem:[%s1 + $0x168] sm:$0xff]
      %v414 = vld [vmem:[%s1 + $0x170] sm:$0xff]
      %v415 = vld [vmem:[%s1 + $0x178] sm:$0xff]
      %v416 = vld [vmem:[%s2] sm:$0x1]
      %v417 = vperm.slane %v416, 0
      %418 = vmatpush.msra.mxu0 %v383
      %419 = vmatpush.msra.mxu0 %v382
      %420 = vmatpush.msra.mxu0 %v381
      %421 = vmatpush.msra.mxu0 %v380
      %422 = vmatpush.msra.mxu0 %v379
      %423 = vmatpush.msra.mxu0 %v378
      %424 = vmatpush.msra.mxu0 %v377
      %425 = vmatpush.msra.mxu0 %v376
      %426 = vmatpush.msra.mxu0 %v375
      %427 = vmatpush.msra.mxu0 %v374
      %428 = vmatpush.msra.mxu0 %v373
      %429 = vmatpush.msra.mxu0 %v372
      %430 = vmatpush.msra.mxu0 %v371
      %431 = vmatpush.msra.mxu0 %v370
      %432 = vmatpush.msra.mxu0 %v369
      %433 = vmatpush.msra.mxu0 %v368
      %434 = vmatmul.f32.gmra.mxu0 %v272
      %v435 = vpop.f32.mrf.mxu0
      %v436 = vadd.f32 %v417, %v435
      %437 = vmatmul.f32.gmra.mxu0 %v273
      %v438 = vpop.f32.mrf.mxu0
      %v439 = vadd.f32 %v417, %v438
      %440 = vmatmul.f32.gmra.mxu0 %v274
      %v441 = vpop.f32.mrf.mxu0
      %v442 = vadd.f32 %v417, %v441
      %443 = vmatmul.f32.gmra.mxu0 %v275
      %v444 = vpop.f32.mrf.mxu0
      %v445 = vadd.f32 %v417, %v444
      %446 = vmatmul.f32.gmra.mxu0 %v276
      %v447 = vpop.f32.mrf.mxu0
      %v448 = vadd.f32 %v417, %v447
      %449 = vmatmul.f32.gmra.mxu0 %v277
      %v450 = vpop.f32.mrf.mxu0
      %v451 = vadd.f32 %v417, %v450
      %452 = vmatmul.f32.gmra.mxu0 %v278
      %v453 = vpop.f32.mrf.mxu0
      %v454 = vadd.f32 %v417, %v453
      %455 = vmatmul.f32.gmra.mxu0 %v279
      %v456 = vpop.f32.mrf.mxu0
      %v457 = vadd.f32 %v417, %v456
      %458 = vmatmul.f32.gmra.mxu0 %v280
      %v459 = vpop.f32.mrf.mxu0
      %v460 = vadd.f32 %v417, %v459
      %461 = vmatmul.f32.gmra.mxu0 %v281
      %v462 = vpop.f32.mrf.mxu0
      %v463 = vadd.f32 %v417, %v462
      %464 = vmatmul.f32.gmra.mxu0 %v282
      %v465 = vpop.f32.mrf.mxu0
      %v466 = vadd.f32 %v417, %v465
      %467 = vmatmul.f32.gmra.mxu0 %v283
      %v468 = vpop.f32.mrf.mxu0
      %v469 = vadd.f32 %v417, %v468
      %470 = vdwg.mxu0
      %471 = vmatpush.msra.mxu0 %v399
      %472 = vmatpush.msra.mxu0 %v398
      %473 = vmatpush.msra.mxu0 %v397
      %474 = vmatpush.msra.mxu0 %v396
      %475 = vmatpush.msra.mxu0 %v395
      %476 = vmatpush.msra.mxu0 %v394
      %477 = vmatpush.msra.mxu0 %v393
      %478 = vmatpush.msra.mxu0 %v392
      %479 = vmatpush.msra.mxu0 %v391
      %480 = vmatpush.msra.mxu0 %v390
      %481 = vmatpush.msra.mxu0 %v389
      %482 = vmatpush.msra.mxu0 %v388
      %483 = vmatpush.msra.mxu0 %v387
      %484 = vmatpush.msra.mxu0 %v386
      %485 = vmatpush.msra.mxu0 %v385
      %486 = vmatpush.msra.mxu0 %v384
      %487 = vmatmul.f32.gmra.mxu0 %v299
      %v488 = vpop.f32.mrf.mxu0
      %v489 = vadd.f32 %v436, %v488
      %490 = vmatmul.f32.gmra.mxu0 %v301
      %v491 = vpop.f32.mrf.mxu0
      %v492 = vadd.f32 %v439, %v491
      %493 = vmatmul.f32.gmra.mxu0 %v303
      %v494 = vpop.f32.mrf.mxu0
      %v495 = vadd.f32 %v442, %v494
      %496 = vmatmul.f32.gmra.mxu0 %v305
      %v497 = vpop.f32.mrf.mxu0
      %v498 = vadd.f32 %v445, %v497
      %499 = vmatmul.f32.gmra.mxu0 %v307
      %v500 = vpop.f32.mrf.mxu0
      %v501 = vadd.f32 %v448, %v500
      %502 = vmatmul.f32.gmra.mxu0 %v309
      %v503 = vpop.f32.mrf.mxu0
      %v504 = vadd.f32 %v451, %v503
      %505 = vmatmul.f32.gmra.mxu0 %v311
      %v506 = vpop.f32.mrf.mxu0
      %v507 = vadd.f32 %v454, %v506
      %508 = vmatmul.f32.gmra.mxu0 %v313
      %v509 = vpop.f32.mrf.mxu0
      %v510 = vadd.f32 %v457, %v509
      %511 = vmatmul.f32.gmra.mxu0 %v315
      %v512 = vpop.f32.mrf.mxu0
      %v513 = vadd.f32 %v460, %v512
      %514 = vmatmul.f32.gmra.mxu0 %v317
      %v515 = vpop.f32.mrf.mxu0
      %v516 = vadd.f32 %v463, %v515
      %517 = vmatmul.f32.gmra.mxu0 %v319
      %v518 = vpop.f32.mrf.mxu0
      %v519 = vadd.f32 %v466, %v518
      %520 = vmatmul.f32.gmra.mxu0 %v318
      %v521 = vpop.f32.mrf.mxu0
      %v522 = vadd.f32 %v469, %v521
      %523 = vdwg.mxu0
      %524 = vmatpush.msra.mxu0 %v415
      %525 = vmatpush.msra.mxu0 %v414
      %526 = vmatpush.msra.mxu0 %v413
      %527 = vmatpush.msra.mxu0 %v412
      %528 = vmatpush.msra.mxu0 %v411
      %529 = vmatpush.msra.mxu0 %v410
      %530 = vmatpush.msra.mxu0 %v409
      %531 = vmatpush.msra.mxu0 %v408
      %532 = vmatpush.msra.mxu0 %v407
      %533 = vmatpush.msra.mxu0 %v406
      %534 = vmatpush.msra.mxu0 %v405
      %535 = vmatpush.msra.mxu0 %v404
      %536 = vmatpush.msra.mxu0 %v403
      %537 = vmatpush.msra.mxu0 %v402
      %538 = vmatpush.msra.mxu0 %v401
      %539 = vmatpush.msra.mxu0 %v400
      %540 = vmatmul.f32.gmra.mxu0 %v335
      %v541 = vpop.f32.mrf.mxu0
      %v542 = vadd.f32 %v489, %v541
      %543 = vmatmul.f32.gmra.mxu0 %v337
      %v544 = vpop.f32.mrf.mxu0
      %v545 = vadd.f32 %v492, %v544
      %546 = vmatmul.f32.gmra.mxu0 %v339
      %v547 = vpop.f32.mrf.mxu0
      %v548 = vadd.f32 %v495, %v547
      %549 = vmatmul.f32.gmra.mxu0 %v341
      %v550 = vpop.f32.mrf.mxu0
      %v551 = vadd.f32 %v498, %v550
      %552 = vmatmul.f32.gmra.mxu0 %v343
      %v553 = vpop.f32.mrf.mxu0
      %v554 = vadd.f32 %v501, %v553
      %555 = vmatmul.f32.gmra.mxu0 %v345
      %v556 = vpop.f32.mrf.mxu0
      %v557 = vadd.f32 %v504, %v556
      %558 = vmatmul.f32.gmra.mxu0 %v347
      %v559 = vpop.f32.mrf.mxu0
      %v560 = vadd.f32 %v507, %v559
      %561 = vmatmul.f32.gmra.mxu0 %v349
      %v562 = vpop.f32.mrf.mxu0
      %v563 = vadd.f32 %v510, %v562
      %564 = vmatmul.f32.gmra.mxu0 %v351
      %v565 = vpop.f32.mrf.mxu0
      %v566 = vadd.f32 %v513, %v565
      %567 = vmatmul.f32.gmra.mxu0 %v353
      %v568 = vpop.f32.mrf.mxu0
      %v569 = vadd.f32 %v516, %v568
      %570 = vmatmul.f32.gmra.mxu0 %v355
      %v571 = vpop.f32.mrf.mxu0
      %v572 = vadd.f32 %v519, %v571
      %573 = vmatmul.f32.gmra.mxu0 %v354
      %v574 = vpop.f32.mrf.mxu0
      %v575 = vadd.f32 %v522, %v574
      %576 = vdwg.mxu0
      %vm577 = vcmp.ge.s32.totalorder %v236, 0
      %vm578 = vcmp.ge.s32.totalorder %v237, 0
      %vm579 = vcmp.ge.s32.totalorder %v238, 0
      %vm580 = vcmp.ge.s32.totalorder %v239, 0
      %vm581 = vcmp.ge.s32.totalorder %v240, 0
      %vm582 = vcmp.ge.s32.totalorder %v241, 0
      %vm583 = vcmp.ge.s32.totalorder %v242, 0
      %vm584 = vcmp.ge.s32.totalorder %v243, 0
      %vm585 = vcmp.ge.s32.totalorder %v244, 0
      %vm586 = vcmp.ge.s32.totalorder %v245, 0
      %vm587 = vcmp.ge.s32.totalorder %v246, 0
      %vm588 = vcmp.ge.s32.totalorder %v247, 0
      %vm589 = vcmp.lt.s32.totalorder %v236, 160
      %vm590 = vcmp.lt.s32.totalorder %v237, 160
      %vm591 = vcmp.lt.s32.totalorder %v238, 160
      %vm592 = vcmp.lt.s32.totalorder %v239, 160
      %vm593 = vcmp.lt.s32.totalorder %v240, 160
      %vm594 = vcmp.lt.s32.totalorder %v241, 160
      %vm595 = vcmp.lt.s32.totalorder %v242, 160
      %vm596 = vcmp.lt.s32.totalorder %v243, 160
      %vm597 = vcmp.lt.s32.totalorder %v244, 160
      %vm598 = vcmp.lt.s32.totalorder %v245, 160
      %vm599 = vcmp.lt.s32.totalorder %v246, 160
      %vm600 = vcmp.lt.s32.totalorder %v247, 160
      %vm601 = vmand %vm577, %vm589
      %vm602 = vmand %vm578, %vm590
      %vm603 = vmand %vm579, %vm591
      %vm604 = vmand %vm580, %vm592
      %vm605 = vmand %vm581, %vm593
      %vm606 = vmand %vm582, %vm594
      %vm607 = vmand %vm583, %vm595
      %vm608 = vmand %vm584, %vm596
      %vm609 = vmand %vm585, %vm597
      %vm610 = vmand %vm586, %vm598
      %vm611 = vmand %vm587, %vm599
      %vm612 = vmand %vm588, %vm600
      %v613 = vsel %vm601, 1, 0
      %v614 = vsel %vm602, 1, 0
      %v615 = vsel %vm603, 1, 0
      %v616 = vsel %vm604, 1, 0
      %v617 = vsel %vm605, 1, 0
      %v618 = vsel %vm606, 1, 0
      %v619 = vsel %vm607, 1, 0
      %v620 = vsel %vm608, 1, 0
      %v621 = vsel %vm609, 1, 0
      %v622 = vsel %vm610, 1, 0
      %v623 = vsel %vm611, 1, 0
      %v624 = vsel %vm612, 1, 0
      %vm625 = vcmp.eq.s32.totalorder %v613, 1
      %vm626 = vcmp.eq.s32.totalorder %v614, 1
      %vm627 = vcmp.eq.s32.totalorder %v615, 1
      %vm628 = vcmp.eq.s32.totalorder %v616, 1
      %vm629 = vcmp.eq.s32.totalorder %v617, 1
      %vm630 = vcmp.eq.s32.totalorder %v618, 1
      %vm631 = vcmp.eq.s32.totalorder %v619, 1
      %vm632 = vcmp.eq.s32.totalorder %v620, 1
      %vm633 = vcmp.eq.s32.totalorder %v621, 1
      %vm634 = vcmp.eq.s32.totalorder %v622, 1
      %vm635 = vcmp.eq.s32.totalorder %v623, 1
      %vm636 = vcmp.eq.s32.totalorder %v624, 1
      %vm649 = vcmask 1040384
      %v650 = vrot.slane %v542, 7
      %v651 = vrot.slane %v545, 7
      %v652 = vsel %vm649, %v650, %v651
      %v653 = vrot.slane %v548, 7
      %v654 = vsel %vm649, %v651, %v653
      %v655 = vrot.slane %v551, 7
      %v656 = vsel %vm649, %v653, %v655
      %v657 = vrot.slane %v554, 7
      %v658 = vsel %vm649, %v655, %v657
      %v659 = vrot.slane %v557, 7
      %v660 = vsel %vm649, %v657, %v659
      %v661 = vrot.slane %v560, 7
      %v662 = vsel %vm649, %v659, %v661
      %v663 = vrot.slane %v563, 7
      %v664 = vsel %vm649, %v661, %v663
      %v665 = vrot.slane %v566, 7
      %v666 = vsel %vm649, %v663, %v665
      %v667 = vrot.slane %v569, 7
      %v668 = vsel %vm649, %v665, %v667
      %v669 = vrot.slane %v572, 7
      %v670 = vsel %vm649, %v667, %v669
      %v671 = vrot.slane %v575, 7
      %v672 = vsel %vm649, %v669, %v671
      %v685 = vsel %vm625, %v650, 0.0
      %v686 = vsel %vm626, %v652, 0.0
      %v687 = vsel %vm627, %v654, 0.0
      %v688 = vsel %vm628, %v656, 0.0
      %v689 = vsel %vm629, %v658, 0.0
      %v690 = vsel %vm630, %v660, 0.0
      %v691 = vsel %vm631, %v662, 0.0
      %v692 = vsel %vm632, %v664, 0.0
      %v693 = vsel %vm633, %v666, 0.0
      %v694 = vsel %vm634, %v668, 0.0
      %v695 = vsel %vm635, %v670, 0.0
      %v696 = vsel %vm636, %v672, 0.0
      %vm697 = vcmp.ge.f32.partialorder %v685, 0.0
      %vm698 = vcmp.ge.f32.partialorder %v686, 0.0
      %vm699 = vcmp.ge.f32.partialorder %v687, 0.0
      %vm700 = vcmp.ge.f32.partialorder %v688, 0.0
      %vm701 = vcmp.ge.f32.partialorder %v689, 0.0
      %vm702 = vcmp.ge.f32.partialorder %v690, 0.0
      %vm703 = vcmp.ge.f32.partialorder %v691, 0.0
      %vm704 = vcmp.ge.f32.partialorder %v692, 0.0
      %vm705 = vcmp.ge.f32.partialorder %v693, 0.0
      %vm706 = vcmp.ge.f32.partialorder %v694, 0.0
      %vm707 = vcmp.ge.f32.partialorder %v695, 0.0
      %vm708 = vcmp.ge.f32.partialorder %v696, 0.0
      %v709 = vmul.f32 %v685, 0.1
      %v710 = vmul.f32 %v686, 0.1
      %v711 = vmul.f32 %v687, 0.1
      %v712 = vmul.f32 %v688, 0.1
      %v713 = vmul.f32 %v689, 0.1
      %v714 = vmul.f32 %v690, 0.1
      %v715 = vmul.f32 %v691, 0.1
      %v716 = vmul.f32 %v692, 0.1
      %v717 = vmul.f32 %v693, 0.1
      %v718 = vmul.f32 %v694, 0.1
      %v719 = vmul.f32 %v695, 0.1
      %v720 = vmul.f32 %v696, 0.1
      %v721 = vsel %vm697, %v685, %v709
      %v722 = vsel %vm698, %v686, %v710
      %v723 = vsel %vm699, %v687, %v711
      %v724 = vsel %vm700, %v688, %v712
      %v725 = vsel %vm701, %v689, %v713
      %v726 = vsel %vm702, %v690, %v714
      %v727 = vsel %vm703, %v691, %v715
      %v728 = vsel %vm704, %v692, %v716
      %v729 = vsel %vm705, %v693, %v717
      %v730 = vsel %vm706, %v694, %v718
      %v731 = vsel %vm707, %v695, %v719
      %v732 = vsel %vm708, %v696, %v720
      %v745 = vrot.slane %v721, 1
      %v746 = vrot.slane %v722, 1
      %v747 = vsel %vm296, %v745, %v746
      %v748 = vrot.slane %v723, 1
      %v749 = vsel %vm296, %v746, %v748
      %v750 = vrot.slane %v724, 1
      %v751 = vsel %vm296, %v748, %v750
      %v752 = vrot.slane %v725, 1
      %v753 = vsel %vm296, %v750, %v752
      %v754 = vrot.slane %v726, 1
      %v755 = vsel %vm296, %v752, %v754
      %v756 = vrot.slane %v727, 1
      %v757 = vsel %vm296, %v754, %v756
      %v758 = vrot.slane %v728, 1
      %v759 = vsel %vm296, %v756, %v758
      %v760 = vrot.slane %v729, 1
      %v761 = vsel %vm296, %v758, %v760
      %v762 = vrot.slane %v730, 1
      %v763 = vsel %vm296, %v760, %v762
      %v764 = vrot.slane %v731, 1
      %v765 = vsel %vm296, %v762, %v764
      %v766 = vrot.slane %v732, 1
      %v767 = vsel %vm296, %v764, %v766
      %v768 = vrot.slane %v721, 2
      %v769 = vrot.slane %v722, 2
      %v770 = vsel %vm332, %v768, %v769
      %v771 = vrot.slane %v723, 2
      %v772 = vsel %vm332, %v769, %v771
      %v773 = vrot.slane %v724, 2
      %v774 = vsel %vm332, %v771, %v773
      %v775 = vrot.slane %v725, 2
      %v776 = vsel %vm332, %v773, %v775
      %v777 = vrot.slane %v726, 2
      %v778 = vsel %vm332, %v775, %v777
      %v779 = vrot.slane %v727, 2
      %v780 = vsel %vm332, %v777, %v779
      %v781 = vrot.slane %v728, 2
      %v782 = vsel %vm332, %v779, %v781
      %v783 = vrot.slane %v729, 2
      %v784 = vsel %vm332, %v781, %v783
      %v785 = vrot.slane %v730, 2
      %v786 = vsel %vm332, %v783, %v785
      %v787 = vrot.slane %v731, 2
      %v788 = vsel %vm332, %v785, %v787
      %v789 = vrot.slane %v732, 2
      %v790 = vsel %vm332, %v787, %v789
      %s791 = scalar_lea.vmem %s1, 384
      %v792 = vld [vmem:[%s791] sm:$0xff]
      %v793 = vld [vmem:[%s791 + $0x8] sm:$0xff]
      %v794 = vld [vmem:[%s791 + $0x10] sm:$0xff]
      %v795 = vld [vmem:[%s791 + $0x18] sm:$0xff]
      %v796 = vld [vmem:[%s791 + $0x20] sm:$0xff]
      %v797 = vld [vmem:[%s791 + $0x28] sm:$0xff]
      %v798 = vld [vmem:[%s791 + $0x30] sm:$0xff]
      %v799 = vld [vmem:[%s791 + $0x38] sm:$0xff]
      %v800 = vld [vmem:[%s791 + $0x40] sm:$0xff]
      %v801 = vld [vmem:[%s791 + $0x48] sm:$0xff]
      %v802 = vld [vmem:[%s791 + $0x50] sm:$0xff]
      %v803 = vld [vmem:[%s791 + $0x58] sm:$0xff]
      %v804 = vld [vmem:[%s791 + $0x60] sm:$0xff]
      %v805 = vld [vmem:[%s791 + $0x68] sm:$0xff]
      %v806 = vld [vmem:[%s791 + $0x70] sm:$0xff]
      %v807 = vld [vmem:[%s791 + $0x78] sm:$0xff]
      %v808 = vld [vmem:[%s791 + $0x80] sm:$0xff]
      %v809 = vld [vmem:[%s791 + $0x88] sm:$0xff]
      %v810 = vld [vmem:[%s791 + $0x90] sm:$0xff]
      %v811 = vld [vmem:[%s791 + $0x98] sm:$0xff]
      %v812 = vld [vmem:[%s791 + $0xa0] sm:$0xff]
      %v813 = vld [vmem:[%s791 + $0xa8] sm:$0xff]
      %v814 = vld [vmem:[%s791 + $0xb0] sm:$0xff]
      %v815 = vld [vmem:[%s791 + $0xb8] sm:$0xff]
      %v816 = vld [vmem:[%s791 + $0xc0] sm:$0xff]
      %v817 = vld [vmem:[%s791 + $0xc8] sm:$0xff]
      %v818 = vld [vmem:[%s791 + $0xd0] sm:$0xff]
      %v819 = vld [vmem:[%s791 + $0xd8] sm:$0xff]
      %v820 = vld [vmem:[%s791 + $0xe0] sm:$0xff]
      %v821 = vld [vmem:[%s791 + $0xe8] sm:$0xff]
      %v822 = vld [vmem:[%s791 + $0xf0] sm:$0xff]
      %v823 = vld [vmem:[%s791 + $0xf8] sm:$0xff]
      %v824 = vld [vmem:[%s791 + $0x100] sm:$0xff]
      %v825 = vld [vmem:[%s791 + $0x108] sm:$0xff]
      %v826 = vld [vmem:[%s791 + $0x110] sm:$0xff]
      %v827 = vld [vmem:[%s791 + $0x118] sm:$0xff]
      %v828 = vld [vmem:[%s791 + $0x120] sm:$0xff]
      %v829 = vld [vmem:[%s791 + $0x128] sm:$0xff]
      %v830 = vld [vmem:[%s791 + $0x130] sm:$0xff]
      %v831 = vld [vmem:[%s791 + $0x138] sm:$0xff]
      %v832 = vld [vmem:[%s791 + $0x140] sm:$0xff]
      %v833 = vld [vmem:[%s791 + $0x148] sm:$0xff]
      %v834 = vld [vmem:[%s791 + $0x150] sm:$0xff]
      %v835 = vld [vmem:[%s791 + $0x158] sm:$0xff]
      %v836 = vld [vmem:[%s791 + $0x160] sm:$0xff]
      %v837 = vld [vmem:[%s791 + $0x168] sm:$0xff]
      %v838 = vld [vmem:[%s791 + $0x170] sm:$0xff]
      %v839 = vld [vmem:[%s791 + $0x178] sm:$0xff]
      %v840 = vld [vmem:[%s2 + $0x1] sm:$0x1]
      %v841 = vperm.slane %v840, 0
      %v842 = vrot.slane %v747, 1
      %v843 = vrot.slane %v749, 1
      %v844 = vsel %vm296, %v842, %v843
      %v845 = vrot.slane %v770, 1
      %v846 = vrot.slane %v772, 1
      %v847 = vsel %vm296, %v845, %v846
      %v848 = vrot.slane %v751, 1
      %v849 = vsel %vm296, %v843, %v848
      %v850 = vrot.slane %v774, 1
      %v851 = vsel %vm296, %v846, %v850
      %v852 = vrot.slane %v753, 1
      %v853 = vsel %vm296, %v848, %v852
      %v854 = vrot.slane %v776, 1
      %v855 = vsel %vm296, %v850, %v854
      %v856 = vrot.slane %v755, 1
      %v857 = vsel %vm296, %v852, %v856
      %v858 = vrot.slane %v778, 1
      %v859 = vsel %vm296, %v854, %v858
      %v860 = vrot.slane %v757, 1
      %v861 = vsel %vm296, %v856, %v860
      %v862 = vrot.slane %v780, 1
      %v863 = vsel %vm296, %v858, %v862
      %v864 = vrot.slane %v759, 1
      %v865 = vsel %vm296, %v860, %v864
      %v866 = vrot.slane %v782, 1
      %v867 = vsel %vm296, %v862, %v866
      %v868 = vrot.slane %v761, 1
      %v869 = vsel %vm296, %v864, %v868
      %v870 = vrot.slane %v784, 1
      %v871 = vsel %vm296, %v866, %v870
      %v872 = vrot.slane %v763, 1
      %v873 = vsel %vm296, %v868, %v872
      %v874 = vrot.slane %v786, 1
      %v875 = vsel %vm296, %v870, %v874
      %v876 = vrot.slane %v765, 1
      %v877 = vsel %vm296, %v872, %v876
      %v878 = vrot.slane %v788, 1
      %v879 = vsel %vm296, %v874, %v878
      %v880 = vrot.slane %v767, 1
      %v881 = vsel %vm296, %v876, %v880
      %v882 = vrot.slane %v790, 1
      %v883 = vsel %vm296, %v878, %v882
      %v884 = vrot.slane %v766, 1
      %v885 = vsel %vm296, %v880, %v884
      %v886 = vrot.slane %v789, 1
      %v887 = vsel %vm296, %v882, %v886
      %924 = vmatpush.msra.mxu0 %v807
      %925 = vmatpush.msra.mxu0 %v806
      %926 = vmatpush.msra.mxu0 %v805
      %927 = vmatpush.msra.mxu0 %v804
      %928 = vmatpush.msra.mxu0 %v803
      %929 = vmatpush.msra.mxu0 %v802
      %930 = vmatpush.msra.mxu0 %v801
      %931 = vmatpush.msra.mxu0 %v800
      %932 = vmatpush.msra.mxu0 %v799
      %933 = vmatpush.msra.mxu0 %v798
      %934 = vmatpush.msra.mxu0 %v797
      %935 = vmatpush.msra.mxu0 %v796
      %936 = vmatpush.msra.mxu0 %v795
      %937 = vmatpush.msra.mxu0 %v794
      %938 = vmatpush.msra.mxu0 %v793
      %939 = vmatpush.msra.mxu0 %v792
      %940 = vmatmul.f32.gmra.mxu0 %v747
      %v941 = vpop.f32.mrf.mxu0
      %v942 = vadd.f32 %v841, %v941
      %943 = vmatmul.f32.gmra.mxu0 %v749
      %v944 = vpop.f32.mrf.mxu0
      %v945 = vadd.f32 %v841, %v944
      %946 = vmatmul.f32.gmra.mxu0 %v751
      %v947 = vpop.f32.mrf.mxu0
      %v948 = vadd.f32 %v841, %v947
      %949 = vmatmul.f32.gmra.mxu0 %v753
      %v950 = vpop.f32.mrf.mxu0
      %v951 = vadd.f32 %v841, %v950
      %952 = vmatmul.f32.gmra.mxu0 %v755
      %v953 = vpop.f32.mrf.mxu0
      %v954 = vadd.f32 %v841, %v953
      %955 = vmatmul.f32.gmra.mxu0 %v757
      %v956 = vpop.f32.mrf.mxu0
      %v957 = vadd.f32 %v841, %v956
      %958 = vmatmul.f32.gmra.mxu0 %v759
      %v959 = vpop.f32.mrf.mxu0
      %v960 = vadd.f32 %v841, %v959
      %961 = vmatmul.f32.gmra.mxu0 %v761
      %v962 = vpop.f32.mrf.mxu0
      %v963 = vadd.f32 %v841, %v962
      %964 = vmatmul.f32.gmra.mxu0 %v763
      %v965 = vpop.f32.mrf.mxu0
      %v966 = vadd.f32 %v841, %v965
      %967 = vmatmul.f32.gmra.mxu0 %v765
      %v968 = vpop.f32.mrf.mxu0
      %v969 = vadd.f32 %v841, %v968
      %970 = vmatmul.f32.gmra.mxu0 %v767
      %v971 = vpop.f32.mrf.mxu0
      %v972 = vadd.f32 %v841, %v971
      %973 = vmatmul.f32.gmra.mxu0 %v766
      %v974 = vpop.f32.mrf.mxu0
      %v975 = vadd.f32 %v841, %v974
      %976 = vdwg.mxu0
      %977 = vmatpush.msra.mxu0 %v823
      %978 = vmatpush.msra.mxu0 %v822
      %979 = vmatpush.msra.mxu0 %v821
      %980 = vmatpush.msra.mxu0 %v820
      %981 = vmatpush.msra.mxu0 %v819
      %982 = vmatpush.msra.mxu0 %v818
      %983 = vmatpush.msra.mxu0 %v817
      %984 = vmatpush.msra.mxu0 %v816
      %985 = vmatpush.msra.mxu0 %v815
      %986 = vmatpush.msra.mxu0 %v814
      %987 = vmatpush.msra.mxu0 %v813
      %988 = vmatpush.msra.mxu0 %v812
      %989 = vmatpush.msra.mxu0 %v811
      %990 = vmatpush.msra.mxu0 %v810
      %991 = vmatpush.msra.mxu0 %v809
      %992 = vmatpush.msra.mxu0 %v808
      %993 = vmatmul.f32.gmra.mxu0 %v844
      %v994 = vpop.f32.mrf.mxu0
      %v995 = vadd.f32 %v942, %v994
      %996 = vmatmul.f32.gmra.mxu0 %v849
      %v997 = vpop.f32.mrf.mxu0
      %v998 = vadd.f32 %v945, %v997
      %999 = vmatmul.f32.gmra.mxu0 %v853
      %v1000 = vpop.f32.mrf.mxu0
      %v1001 = vadd.f32 %v948, %v1000
      %1002 = vmatmul.f32.gmra.mxu0 %v857
      %v1003 = vpop.f32.mrf.mxu0
      %v1004 = vadd.f32 %v951, %v1003
      %1005 = vmatmul.f32.gmra.mxu0 %v861
      %v1006 = vpop.f32.mrf.mxu0
      %v1007 = vadd.f32 %v954, %v1006
      %1008 = vmatmul.f32.gmra.mxu0 %v865
      %v1009 = vpop.f32.mrf.mxu0
      %v1010 = vadd.f32 %v957, %v1009
      %1011 = vmatmul.f32.gmra.mxu0 %v869
      %v1012 = vpop.f32.mrf.mxu0
      %v1013 = vadd.f32 %v960, %v1012
      %1014 = vmatmul.f32.gmra.mxu0 %v873
      %v1015 = vpop.f32.mrf.mxu0
      %v1016 = vadd.f32 %v963, %v1015
      %1017 = vmatmul.f32.gmra.mxu0 %v877
      %v1018 = vpop.f32.mrf.mxu0
      %v1019 = vadd.f32 %v966, %v1018
      %1020 = vmatmul.f32.gmra.mxu0 %v881
      %v1021 = vpop.f32.mrf.mxu0
      %v1022 = vadd.f32 %v969, %v1021
      %1023 = vmatmul.f32.gmra.mxu0 %v885
      %v1024 = vpop.f32.mrf.mxu0
      %v1025 = vadd.f32 %v972, %v1024
      %1026 = vmatmul.f32.gmra.mxu0 %v884
      %v1027 = vpop.f32.mrf.mxu0
      %v1028 = vadd.f32 %v975, %v1027
      %1029 = vdwg.mxu0
      %1030 = vmatpush.msra.mxu0 %v839
      %1031 = vmatpush.msra.mxu0 %v838
      %1032 = vmatpush.msra.mxu0 %v837
      %1033 = vmatpush.msra.mxu0 %v836
      %1034 = vmatpush.msra.mxu0 %v835
      %1035 = vmatpush.msra.mxu0 %v834
      %1036 = vmatpush.msra.mxu0 %v833
      %1037 = vmatpush.msra.mxu0 %v832
      %1038 = vmatpush.msra.mxu0 %v831
      %1039 = vmatpush.msra.mxu0 %v830
      %1040 = vmatpush.msra.mxu0 %v829
      %1041 = vmatpush.msra.mxu0 %v828
      %1042 = vmatpush.msra.mxu0 %v827
      %1043 = vmatpush.msra.mxu0 %v826
      %1044 = vmatpush.msra.mxu0 %v825
      %1045 = vmatpush.msra.mxu0 %v824
      %1046 = vmatmul.f32.gmra.mxu0 %v847
      %v1047 = vpop.f32.mrf.mxu0
      %v1048 = vadd.f32 %v995, %v1047
      %1049 = vmatmul.f32.gmra.mxu0 %v851
      %v1050 = vpop.f32.mrf.mxu0
      %v1051 = vadd.f32 %v998, %v1050
      %1052 = vmatmul.f32.gmra.mxu0 %v855
      %v1053 = vpop.f32.mrf.mxu0
      %v1054 = vadd.f32 %v1001, %v1053
      %1055 = vmatmul.f32.gmra.mxu0 %v859
      %v1056 = vpop.f32.mrf.mxu0
      %v1057 = vadd.f32 %v1004, %v1056
      %1058 = vmatmul.f32.gmra.mxu0 %v863
      %v1059 = vpop.f32.mrf.mxu0
      %v1060 = vadd.f32 %v1007, %v1059
      %1061 = vmatmul.f32.gmra.mxu0 %v867
      %v1062 = vpop.f32.mrf.mxu0
      %v1063 = vadd.f32 %v1010, %v1062
      %1064 = vmatmul.f32.gmra.mxu0 %v871
      %v1065 = vpop.f32.mrf.mxu0
      %v1066 = vadd.f32 %v1013, %v1065
      %1067 = vmatmul.f32.gmra.mxu0 %v875
      %v1068 = vpop.f32.mrf.mxu0
      %v1069 = vadd.f32 %v1016, %v1068
      %1070 = vmatmul.f32.gmra.mxu0 %v879
      %v1071 = vpop.f32.mrf.mxu0
      %v1072 = vadd.f32 %v1019, %v1071
      %1073 = vmatmul.f32.gmra.mxu0 %v883
      %v1074 = vpop.f32.mrf.mxu0
      %v1075 = vadd.f32 %v1022, %v1074
      %1076 = vmatmul.f32.gmra.mxu0 %v887
      %v1077 = vpop.f32.mrf.mxu0
      %v1078 = vadd.f32 %v1025, %v1077
      %1079 = vmatmul.f32.gmra.mxu0 %v886
      %v1080 = vpop.f32.mrf.mxu0
      %v1081 = vadd.f32 %v1028, %v1080
      %1082 = vdwg.mxu0
      %vm1095 = vcmask 1041408
      %v1096 = vrot.slane %v1048, 6
      %v1097 = vrot.slane %v1051, 6
      %v1098 = vsel %vm1095, %v1096, %v1097
      %v1099 = vrot.slane %v1054, 6
      %v1100 = vsel %vm1095, %v1097, %v1099
      %v1101 = vrot.slane %v1057, 6
      %v1102 = vsel %vm1095, %v1099, %v1101
      %v1103 = vrot.slane %v1060, 6
      %v1104 = vsel %vm1095, %v1101, %v1103
      %v1105 = vrot.slane %v1063, 6
      %v1106 = vsel %vm1095, %v1103, %v1105
      %v1107 = vrot.slane %v1066, 6
      %v1108 = vsel %vm1095, %v1105, %v1107
      %v1109 = vrot.slane %v1069, 6
      %v1110 = vsel %vm1095, %v1107, %v1109
      %v1111 = vrot.slane %v1072, 6
      %v1112 = vsel %vm1095, %v1109, %v1111
      %v1113 = vrot.slane %v1075, 6
      %v1114 = vsel %vm1095, %v1111, %v1113
      %v1115 = vrot.slane %v1078, 6
      %v1116 = vsel %vm1095, %v1113, %v1115
      %v1117 = vrot.slane %v1081, 6
      %v1118 = vsel %vm1095, %v1115, %v1117
      %v1131 = vsel %vm625, %v1096, 0.0
      %v1132 = vsel %vm626, %v1098, 0.0
      %v1133 = vsel %vm627, %v1100, 0.0
      %v1134 = vsel %vm628, %v1102, 0.0
      %v1135 = vsel %vm629, %v1104, 0.0
      %v1136 = vsel %vm630, %v1106, 0.0
      %v1137 = vsel %vm631, %v1108, 0.0
      %v1138 = vsel %vm632, %v1110, 0.0
      %v1139 = vsel %vm633, %v1112, 0.0
      %v1140 = vsel %vm634, %v1114, 0.0
      %v1141 = vsel %vm635, %v1116, 0.0
      %v1142 = vsel %vm636, %v1118, 0.0
      %v1143 = vadd.f32 %v1131, %v208
      %v1144 = vadd.f32 %v1132, %v209
      %v1145 = vadd.f32 %v1133, %v210
      %v1146 = vadd.f32 %v1134, %v211
      %v1147 = vadd.f32 %v1135, %v212
      %v1148 = vadd.f32 %v1136, %v213
      %v1149 = vadd.f32 %v1137, %v214
      %v1150 = vadd.f32 %v1138, %v215
      %v1151 = vadd.f32 %v1139, %v216
      %v1152 = vadd.f32 %v1140, %v217
      %v1153 = vadd.f32 %v1141, %v218
      %v1154 = vadd.f32 %v1142, %v219
      %vm1155 = vcmp.ge.f32.partialorder %v1143, 0.0
      %vm1156 = vcmp.ge.f32.partialorder %v1144, 0.0
      %vm1157 = vcmp.ge.f32.partialorder %v1145, 0.0
      %vm1158 = vcmp.ge.f32.partialorder %v1146, 0.0
      %vm1159 = vcmp.ge.f32.partialorder %v1147, 0.0
      %vm1160 = vcmp.ge.f32.partialorder %v1148, 0.0
      %vm1161 = vcmp.ge.f32.partialorder %v1149, 0.0
      %vm1162 = vcmp.ge.f32.partialorder %v1150, 0.0
      %vm1163 = vcmp.ge.f32.partialorder %v1151, 0.0
      %vm1164 = vcmp.ge.f32.partialorder %v1152, 0.0
      %vm1165 = vcmp.ge.f32.partialorder %v1153, 0.0
      %vm1166 = vcmp.ge.f32.partialorder %v1154, 0.0
      %v1167 = vmul.f32 %v1143, 0.1
      %v1168 = vmul.f32 %v1144, 0.1
      %v1169 = vmul.f32 %v1145, 0.1
      %v1170 = vmul.f32 %v1146, 0.1
      %v1171 = vmul.f32 %v1147, 0.1
      %v1172 = vmul.f32 %v1148, 0.1
      %v1173 = vmul.f32 %v1149, 0.1
      %v1174 = vmul.f32 %v1150, 0.1
      %v1175 = vmul.f32 %v1151, 0.1
      %v1176 = vmul.f32 %v1152, 0.1
      %v1177 = vmul.f32 %v1153, 0.1
      %v1178 = vmul.f32 %v1154, 0.1
      %v1179 = vsel %vm1155, %v1143, %v1167
      %v1180 = vsel %vm1156, %v1144, %v1168
      %v1181 = vsel %vm1157, %v1145, %v1169
      %v1182 = vsel %vm1158, %v1146, %v1170
      %v1183 = vsel %vm1159, %v1147, %v1171
      %v1184 = vsel %vm1160, %v1148, %v1172
      %v1185 = vsel %vm1161, %v1149, %v1173
      %v1186 = vsel %vm1162, %v1150, %v1174
      %v1187 = vsel %vm1163, %v1151, %v1175
      %v1188 = vsel %vm1164, %v1152, %v1176
      %v1189 = vsel %vm1165, %v1153, %v1177
      %v1190 = vsel %vm1166, %v1154, %v1178
      %vm1203 = vcmask 1044480
      %v1204 = vrot.slane %v1179, 3
      %v1205 = vrot.slane %v1180, 3
      %v1206 = vsel %vm1203, %v1204, %v1205
      %v1207 = vrot.slane %v1181, 3
      %v1208 = vsel %vm1203, %v1205, %v1207
      %v1209 = vrot.slane %v1182, 3
      %v1210 = vsel %vm1203, %v1207, %v1209
      %v1211 = vrot.slane %v1183, 3
      %v1212 = vsel %vm1203, %v1209, %v1211
      %v1213 = vrot.slane %v1184, 3
      %v1214 = vsel %vm1203, %v1211, %v1213
      %v1215 = vrot.slane %v1185, 3
      %v1216 = vsel %vm1203, %v1213, %v1215
      %v1217 = vrot.slane %v1186, 3
      %v1218 = vsel %vm1203, %v1215, %v1217
      %v1219 = vrot.slane %v1187, 3
      %v1220 = vsel %vm1203, %v1217, %v1219
      %v1221 = vrot.slane %v1188, 3
      %v1222 = vsel %vm1203, %v1219, %v1221
      %v1223 = vrot.slane %v1189, 3
      %v1224 = vsel %vm1203, %v1221, %v1223
      %v1225 = vrot.slane %v1190, 3
      %v1226 = vsel %vm1203, %v1223, %v1225
      %v1227 = vrot.slane %v1180, 6
      %v1228 = vrot.slane %v1181, 6
      %v1229 = vsel %vm1095, %v1227, %v1228
      %v1230 = vrot.slane %v1182, 6
      %v1231 = vsel %vm1095, %v1228, %v1230
      %v1232 = vrot.slane %v1183, 6
      %v1233 = vsel %vm1095, %v1230, %v1232
      %v1234 = vrot.slane %v1184, 6
      %v1235 = vsel %vm1095, %v1232, %v1234
      %v1236 = vrot.slane %v1185, 6
      %v1237 = vsel %vm1095, %v1234, %v1236
      %v1238 = vrot.slane %v1186, 6
      %v1239 = vsel %vm1095, %v1236, %v1238
      %v1240 = vrot.slane %v1187, 6
      %v1241 = vsel %vm1095, %v1238, %v1240
      %v1242 = vrot.slane %v1188, 6
      %v1243 = vsel %vm1095, %v1240, %v1242
      %v1244 = vrot.slane %v1189, 6
      %v1245 = vsel %vm1095, %v1242, %v1244
      %v1246 = vrot.slane %v1190, 6
      %v1247 = vsel %vm1095, %v1244, %v1246
      %s1248 = scalar_lea.vmem %s1, 768
      %v1249 = vld [vmem:[%s1248] sm:$0xff]
      %v1250 = vld [vmem:[%s1248 + $0x8] sm:$0xff]
      %v1251 = vld [vmem:[%s1248 + $0x10] sm:$0xff]
      %v1252 = vld [vmem:[%s1248 + $0x18] sm:$0xff]
      %v1253 = vld [vmem:[%s1248 + $0x20] sm:$0xff]
      %v1254 = vld [vmem:[%s1248 + $0x28] sm:$0xff]
      %v1255 = vld [vmem:[%s1248 + $0x30] sm:$0xff]
      %v1256 = vld [vmem:[%s1248 + $0x38] sm:$0xff]
      %v1257 = vld [vmem:[%s1248 + $0x40] sm:$0xff]
      %v1258 = vld [vmem:[%s1248 + $0x48] sm:$0xff]
      %v1259 = vld [vmem:[%s1248 + $0x50] sm:$0xff]
      %v1260 = vld [vmem:[%s1248 + $0x58] sm:$0xff]
      %v1261 = vld [vmem:[%s1248 + $0x60] sm:$0xff]
      %v1262 = vld [vmem:[%s1248 + $0x68] sm:$0xff]
      %v1263 = vld [vmem:[%s1248 + $0x70] sm:$0xff]
      %v1264 = vld [vmem:[%s1248 + $0x78] sm:$0xff]
      %v1265 = vld [vmem:[%s1248 + $0x80] sm:$0xff]
      %v1266 = vld [vmem:[%s1248 + $0x88] sm:$0xff]
      %v1267 = vld [vmem:[%s1248 + $0x90] sm:$0xff]
      %v1268 = vld [vmem:[%s1248 + $0x98] sm:$0xff]
      %v1269 = vld [vmem:[%s1248 + $0xa0] sm:$0xff]
      %v1270 = vld [vmem:[%s1248 + $0xa8] sm:$0xff]
      %v1271 = vld [vmem:[%s1248 + $0xb0] sm:$0xff]
      %v1272 = vld [vmem:[%s1248 + $0xb8] sm:$0xff]
      %v1273 = vld [vmem:[%s1248 + $0xc0] sm:$0xff]
      %v1274 = vld [vmem:[%s1248 + $0xc8] sm:$0xff]
      %v1275 = vld [vmem:[%s1248 + $0xd0] sm:$0xff]
      %v1276 = vld [vmem:[%s1248 + $0xd8] sm:$0xff]
      %v1277 = vld [vmem:[%s1248 + $0xe0] sm:$0xff]
      %v1278 = vld [vmem:[%s1248 + $0xe8] sm:$0xff]
      %v1279 = vld [vmem:[%s1248 + $0xf0] sm:$0xff]
      %v1280 = vld [vmem:[%s1248 + $0xf8] sm:$0xff]
      %v1281 = vld [vmem:[%s1248 + $0x100] sm:$0xff]
      %v1282 = vld [vmem:[%s1248 + $0x108] sm:$0xff]
      %v1283 = vld [vmem:[%s1248 + $0x110] sm:$0xff]
      %v1284 = vld [vmem:[%s1248 + $0x118] sm:$0xff]
      %v1285 = vld [vmem:[%s1248 + $0x120] sm:$0xff]
      %v1286 = vld [vmem:[%s1248 + $0x128] sm:$0xff]
      %v1287 = vld [vmem:[%s1248 + $0x130] sm:$0xff]
      %v1288 = vld [vmem:[%s1248 + $0x138] sm:$0xff]
      %v1289 = vld [vmem:[%s1248 + $0x140] sm:$0xff]
      %v1290 = vld [vmem:[%s1248 + $0x148] sm:$0xff]
      %v1291 = vld [vmem:[%s1248 + $0x150] sm:$0xff]
      %v1292 = vld [vmem:[%s1248 + $0x158] sm:$0xff]
      %v1293 = vld [vmem:[%s1248 + $0x160] sm:$0xff]
      %v1294 = vld [vmem:[%s1248 + $0x168] sm:$0xff]
      %v1295 = vld [vmem:[%s1248 + $0x170] sm:$0xff]
      %v1296 = vld [vmem:[%s1248 + $0x178] sm:$0xff]
      %v1297 = vld [vmem:[%s2 + $0x2] sm:$0x1]
      %v1298 = vperm.slane %v1297, 0
      %v1299 = vrot.slane %v1179, 2
      %v1300 = vrot.slane %v1180, 2
      %v1301 = vsel %vm332, %v1299, %v1300
      %v1302 = vrot.slane %v1206, 2
      %v1303 = vrot.slane %v1208, 2
      %v1304 = vsel %vm332, %v1302, %v1303
      %v1305 = vrot.slane %v1227, 2
      %v1306 = vrot.slane %v1229, 2
      %v1307 = vsel %vm332, %v1305, %v1306
      %v1308 = vrot.slane %v1181, 2
      %v1309 = vsel %vm332, %v1300, %v1308
      %v1310 = vrot.slane %v1210, 2
      %v1311 = vsel %vm332, %v1303, %v1310
      %v1312 = vrot.slane %v1231, 2
      %v1313 = vsel %vm332, %v1306, %v1312
      %v1314 = vrot.slane %v1182, 2
      %v1315 = vsel %vm332, %v1308, %v1314
      %v1316 = vrot.slane %v1212, 2
      %v1317 = vsel %vm332, %v1310, %v1316
      %v1318 = vrot.slane %v1233, 2
      %v1319 = vsel %vm332, %v1312, %v1318
      %v1320 = vrot.slane %v1183, 2
      %v1321 = vsel %vm332, %v1314, %v1320
      %v1322 = vrot.slane %v1214, 2
      %v1323 = vsel %vm332, %v1316, %v1322
      %v1324 = vrot.slane %v1235, 2
      %v1325 = vsel %vm332, %v1318, %v1324
      %v1326 = vrot.slane %v1184, 2
      %v1327 = vsel %vm332, %v1320, %v1326
      %v1328 = vrot.slane %v1216, 2
      %v1329 = vsel %vm332, %v1322, %v1328
      %v1330 = vrot.slane %v1237, 2
      %v1331 = vsel %vm332, %v1324, %v1330
      %v1332 = vrot.slane %v1185, 2
      %v1333 = vsel %vm332, %v1326, %v1332
      %v1334 = vrot.slane %v1218, 2
      %v1335 = vsel %vm332, %v1328, %v1334
      %v1336 = vrot.slane %v1239, 2
      %v1337 = vsel %vm332, %v1330, %v1336
      %v1338 = vrot.slane %v1186, 2
      %v1339 = vsel %vm332, %v1332, %v1338
      %v1340 = vrot.slane %v1220, 2
      %v1341 = vsel %vm332, %v1334, %v1340
      %v1342 = vrot.slane %v1241, 2
      %v1343 = vsel %vm332, %v1336, %v1342
      %v1344 = vrot.slane %v1187, 2
      %v1345 = vsel %vm332, %v1338, %v1344
      %v1346 = vrot.slane %v1222, 2
      %v1347 = vsel %vm332, %v1340, %v1346
      %v1348 = vrot.slane %v1243, 2
      %v1349 = vsel %vm332, %v1342, %v1348
      %v1350 = vrot.slane %v1188, 2
      %v1351 = vsel %vm332, %v1344, %v1350
      %v1352 = vrot.slane %v1224, 2
      %v1353 = vsel %vm332, %v1346, %v1352
      %v1354 = vrot.slane %v1245, 2
      %v1355 = vsel %vm332, %v1348, %v1354
      %v1356 = vrot.slane %v1189, 2
      %v1357 = vsel %vm332, %v1350, %v1356
      %v1358 = vrot.slane %v1226, 2
      %v1359 = vsel %vm332, %v1352, %v1358
      %v1360 = vrot.slane %v1247, 2
      %v1361 = vsel %vm332, %v1354, %v1360
      %1395 = vmatpush.msra.mxu0 %v1264
      %1396 = vmatpush.msra.mxu0 %v1263
      %1397 = vmatpush.msra.mxu0 %v1262
      %1398 = vmatpush.msra.mxu0 %v1261
      %1399 = vmatpush.msra.mxu0 %v1260
      %1400 = vmatpush.msra.mxu0 %v1259
      %1401 = vmatpush.msra.mxu0 %v1258
      %1402 = vmatpush.msra.mxu0 %v1257
      %1403 = vmatpush.msra.mxu0 %v1256
      %1404 = vmatpush.msra.mxu0 %v1255
      %1405 = vmatpush.msra.mxu0 %v1254
      %1406 = vmatpush.msra.mxu0 %v1253
      %1407 = vmatpush.msra.mxu0 %v1252
      %1408 = vmatpush.msra.mxu0 %v1251
      %1409 = vmatpush.msra.mxu0 %v1250
      %1410 = vmatpush.msra.mxu0 %v1249
      %1411 = vmatmul.f32.gmra.mxu0 %v1301
      %v1412 = vpop.f32.mrf.mxu0
      %v1413 = vadd.f32 %v1298, %v1412
      %1414 = vmatmul.f32.gmra.mxu0 %v1309
      %v1415 = vpop.f32.mrf.mxu0
      %v1416 = vadd.f32 %v1298, %v1415
      %1417 = vmatmul.f32.gmra.mxu0 %v1315
      %v1418 = vpop.f32.mrf.mxu0
      %v1419 = vadd.f32 %v1298, %v1418
      %1420 = vmatmul.f32.gmra.mxu0 %v1321
      %v1421 = vpop.f32.mrf.mxu0
      %v1422 = vadd.f32 %v1298, %v1421
      %1423 = vmatmul.f32.gmra.mxu0 %v1327
      %v1424 = vpop.f32.mrf.mxu0
      %v1425 = vadd.f32 %v1298, %v1424
      %1426 = vmatmul.f32.gmra.mxu0 %v1333
      %v1427 = vpop.f32.mrf.mxu0
      %v1428 = vadd.f32 %v1298, %v1427
      %1429 = vmatmul.f32.gmra.mxu0 %v1339
      %v1430 = vpop.f32.mrf.mxu0
      %v1431 = vadd.f32 %v1298, %v1430
      %1432 = vmatmul.f32.gmra.mxu0 %v1345
      %v1433 = vpop.f32.mrf.mxu0
      %v1434 = vadd.f32 %v1298, %v1433
      %1435 = vmatmul.f32.gmra.mxu0 %v1351
      %v1436 = vpop.f32.mrf.mxu0
      %v1437 = vadd.f32 %v1298, %v1436
      %1438 = vmatmul.f32.gmra.mxu0 %v1357
      %v1439 = vpop.f32.mrf.mxu0
      %v1440 = vadd.f32 %v1298, %v1439
      %1441 = vmatmul.f32.gmra.mxu0 %v1356
      %v1442 = vpop.f32.mrf.mxu0
      %v1443 = vadd.f32 %v1298, %v1442
      %1444 = vdwg.mxu0
      %1445 = vmatpush.msra.mxu0 %v1280
      %1446 = vmatpush.msra.mxu0 %v1279
      %1447 = vmatpush.msra.mxu0 %v1278
      %1448 = vmatpush.msra.mxu0 %v1277
      %1449 = vmatpush.msra.mxu0 %v1276
      %1450 = vmatpush.msra.mxu0 %v1275
      %1451 = vmatpush.msra.mxu0 %v1274
      %1452 = vmatpush.msra.mxu0 %v1273
      %1453 = vmatpush.msra.mxu0 %v1272
      %1454 = vmatpush.msra.mxu0 %v1271
      %1455 = vmatpush.msra.mxu0 %v1270
      %1456 = vmatpush.msra.mxu0 %v1269
      %1457 = vmatpush.msra.mxu0 %v1268
      %1458 = vmatpush.msra.mxu0 %v1267
      %1459 = vmatpush.msra.mxu0 %v1266
      %1460 = vmatpush.msra.mxu0 %v1265
      %1461 = vmatmul.f32.gmra.mxu0 %v1304
      %v1462 = vpop.f32.mrf.mxu0
      %v1463 = vadd.f32 %v1413, %v1462
      %1464 = vmatmul.f32.gmra.mxu0 %v1311
      %v1465 = vpop.f32.mrf.mxu0
      %v1466 = vadd.f32 %v1416, %v1465
      %1467 = vmatmul.f32.gmra.mxu0 %v1317
      %v1468 = vpop.f32.mrf.mxu0
      %v1469 = vadd.f32 %v1419, %v1468
      %1470 = vmatmul.f32.gmra.mxu0 %v1323
      %v1471 = vpop.f32.mrf.mxu0
      %v1472 = vadd.f32 %v1422, %v1471
      %1473 = vmatmul.f32.gmra.mxu0 %v1329
      %v1474 = vpop.f32.mrf.mxu0
      %v1475 = vadd.f32 %v1425, %v1474
      %1476 = vmatmul.f32.gmra.mxu0 %v1335
      %v1477 = vpop.f32.mrf.mxu0
      %v1478 = vadd.f32 %v1428, %v1477
      %1479 = vmatmul.f32.gmra.mxu0 %v1341
      %v1480 = vpop.f32.mrf.mxu0
      %v1481 = vadd.f32 %v1431, %v1480
      %1482 = vmatmul.f32.gmra.mxu0 %v1347
      %v1483 = vpop.f32.mrf.mxu0
      %v1484 = vadd.f32 %v1434, %v1483
      %1485 = vmatmul.f32.gmra.mxu0 %v1353
      %v1486 = vpop.f32.mrf.mxu0
      %v1487 = vadd.f32 %v1437, %v1486
      %1488 = vmatmul.f32.gmra.mxu0 %v1359
      %v1489 = vpop.f32.mrf.mxu0
      %v1490 = vadd.f32 %v1440, %v1489
      %1491 = vmatmul.f32.gmra.mxu0 %v1358
      %v1492 = vpop.f32.mrf.mxu0
      %v1493 = vadd.f32 %v1443, %v1492
      %1494 = vdwg.mxu0
      %1495 = vmatpush.msra.mxu0 %v1296
      %1496 = vmatpush.msra.mxu0 %v1295
      %1497 = vmatpush.msra.mxu0 %v1294
      %1498 = vmatpush.msra.mxu0 %v1293
      %1499 = vmatpush.msra.mxu0 %v1292
      %1500 = vmatpush.msra.mxu0 %v1291
      %1501 = vmatpush.msra.mxu0 %v1290
      %1502 = vmatpush.msra.mxu0 %v1289
      %1503 = vmatpush.msra.mxu0 %v1288
      %1504 = vmatpush.msra.mxu0 %v1287
      %1505 = vmatpush.msra.mxu0 %v1286
      %1506 = vmatpush.msra.mxu0 %v1285
      %1507 = vmatpush.msra.mxu0 %v1284
      %1508 = vmatpush.msra.mxu0 %v1283
      %1509 = vmatpush.msra.mxu0 %v1282
      %1510 = vmatpush.msra.mxu0 %v1281
      %1511 = vmatmul.f32.gmra.mxu0 %v1307
      %v1512 = vpop.f32.mrf.mxu0
      %v1513 = vadd.f32 %v1463, %v1512
      %1514 = vmatmul.f32.gmra.mxu0 %v1313
      %v1515 = vpop.f32.mrf.mxu0
      %v1516 = vadd.f32 %v1466, %v1515
      %1517 = vmatmul.f32.gmra.mxu0 %v1319
      %v1518 = vpop.f32.mrf.mxu0
      %v1519 = vadd.f32 %v1469, %v1518
      %1520 = vmatmul.f32.gmra.mxu0 %v1325
      %v1521 = vpop.f32.mrf.mxu0
      %v1522 = vadd.f32 %v1472, %v1521
      %1523 = vmatmul.f32.gmra.mxu0 %v1331
      %v1524 = vpop.f32.mrf.mxu0
      %v1525 = vadd.f32 %v1475, %v1524
      %1526 = vmatmul.f32.gmra.mxu0 %v1337
      %v1527 = vpop.f32.mrf.mxu0
      %v1528 = vadd.f32 %v1478, %v1527
      %1529 = vmatmul.f32.gmra.mxu0 %v1343
      %v1530 = vpop.f32.mrf.mxu0
      %v1531 = vadd.f32 %v1481, %v1530
      %1532 = vmatmul.f32.gmra.mxu0 %v1349
      %v1533 = vpop.f32.mrf.mxu0
      %v1534 = vadd.f32 %v1484, %v1533
      %1535 = vmatmul.f32.gmra.mxu0 %v1355
      %v1536 = vpop.f32.mrf.mxu0
      %v1537 = vadd.f32 %v1487, %v1536
      %1538 = vmatmul.f32.gmra.mxu0 %v1361
      %v1539 = vpop.f32.mrf.mxu0
      %v1540 = vadd.f32 %v1490, %v1539
      %1541 = vmatmul.f32.gmra.mxu0 %v1360
      %v1542 = vpop.f32.mrf.mxu0
      %v1543 = vadd.f32 %v1493, %v1542
      %1544 = vdwg.mxu0
      %v1556 = vrot.slane %v1513, 3
      %v1557 = vrot.slane %v1516, 3
      %v1558 = vsel %vm1203, %v1556, %v1557
      %v1559 = vrot.slane %v1519, 3
      %v1560 = vsel %vm1203, %v1557, %v1559
      %v1561 = vrot.slane %v1522, 3
      %v1562 = vsel %vm1203, %v1559, %v1561
      %v1563 = vrot.slane %v1525, 3
      %v1564 = vsel %vm1203, %v1561, %v1563
      %v1565 = vrot.slane %v1528, 3
      %v1566 = vsel %vm1203, %v1563, %v1565
      %v1567 = vrot.slane %v1531, 3
      %v1568 = vsel %vm1203, %v1565, %v1567
      %v1569 = vrot.slane %v1534, 3
      %v1570 = vsel %vm1203, %v1567, %v1569
      %v1571 = vrot.slane %v1537, 3
      %v1572 = vsel %vm1203, %v1569, %v1571
      %v1573 = vrot.slane %v1540, 3
      %v1574 = vsel %vm1203, %v1571, %v1573
      %v1575 = vrot.slane %v1543, 3
      %v1576 = vsel %vm1203, %v1573, %v1575
      %v1589 = vsel %vm625, %v1556, 0.0
      %v1590 = vsel %vm626, %v1558, 0.0
      %v1591 = vsel %vm627, %v1560, 0.0
      %v1592 = vsel %vm628, %v1562, 0.0
      %v1593 = vsel %vm629, %v1564, 0.0
      %v1594 = vsel %vm630, %v1566, 0.0
      %v1595 = vsel %vm631, %v1568, 0.0
      %v1596 = vsel %vm632, %v1570, 0.0
      %v1597 = vsel %vm633, %v1572, 0.0
      %v1598 = vsel %vm634, %v1574, 0.0
      %v1599 = vsel %vm635, %v1576, 0.0
      %v1600 = vsel %vm636, %v1575, 0.0
      %vm1601 = vcmp.ge.f32.partialorder %v1589, 0.0
      %vm1602 = vcmp.ge.f32.partialorder %v1590, 0.0
      %vm1603 = vcmp.ge.f32.partialorder %v1591, 0.0
      %vm1604 = vcmp.ge.f32.partialorder %v1592, 0.0
      %vm1605 = vcmp.ge.f32.partialorder %v1593, 0.0
      %vm1606 = vcmp.ge.f32.partialorder %v1594, 0.0
      %vm1607 = vcmp.ge.f32.partialorder %v1595, 0.0
      %vm1608 = vcmp.ge.f32.partialorder %v1596, 0.0
      %vm1609 = vcmp.ge.f32.partialorder %v1597, 0.0
      %vm1610 = vcmp.ge.f32.partialorder %v1598, 0.0
      %vm1611 = vcmp.ge.f32.partialorder %v1599, 0.0
      %vm1612 = vcmp.ge.f32.partialorder %v1600, 0.0
      %v1613 = vmul.f32 %v1589, 0.1
      %v1614 = vmul.f32 %v1590, 0.1
      %v1615 = vmul.f32 %v1591, 0.1
      %v1616 = vmul.f32 %v1592, 0.1
      %v1617 = vmul.f32 %v1593, 0.1
      %v1618 = vmul.f32 %v1594, 0.1
      %v1619 = vmul.f32 %v1595, 0.1
      %v1620 = vmul.f32 %v1596, 0.1
      %v1621 = vmul.f32 %v1597, 0.1
      %v1622 = vmul.f32 %v1598, 0.1
      %v1623 = vmul.f32 %v1599, 0.1
      %v1624 = vmul.f32 %v1600, 0.1
      %v1625 = vsel %vm1601, %v1589, %v1613
      %v1626 = vsel %vm1602, %v1590, %v1614
      %v1627 = vsel %vm1603, %v1591, %v1615
      %v1628 = vsel %vm1604, %v1592, %v1616
      %v1629 = vsel %vm1605, %v1593, %v1617
      %v1630 = vsel %vm1606, %v1594, %v1618
      %v1631 = vsel %vm1607, %v1595, %v1619
      %v1632 = vsel %vm1608, %v1596, %v1620
      %v1633 = vsel %vm1609, %v1597, %v1621
      %v1634 = vsel %vm1610, %v1598, %v1622
      %v1635 = vsel %vm1611, %v1599, %v1623
      %v1636 = vsel %vm1612, %v1600, %v1624
      %v1649 = vrot.slane %v1625, 1
      %v1650 = vrot.slane %v1626, 1
      %v1651 = vsel %vm296, %v1649, %v1650
      %v1652 = vrot.slane %v1627, 1
      %v1653 = vsel %vm296, %v1650, %v1652
      %v1654 = vrot.slane %v1628, 1
      %v1655 = vsel %vm296, %v1652, %v1654
      %v1656 = vrot.slane %v1629, 1
      %v1657 = vsel %vm296, %v1654, %v1656
      %v1658 = vrot.slane %v1630, 1
      %v1659 = vsel %vm296, %v1656, %v1658
      %v1660 = vrot.slane %v1631, 1
      %v1661 = vsel %vm296, %v1658, %v1660
      %v1662 = vrot.slane %v1632, 1
      %v1663 = vsel %vm296, %v1660, %v1662
      %v1664 = vrot.slane %v1633, 1
      %v1665 = vsel %vm296, %v1662, %v1664
      %v1666 = vrot.slane %v1634, 1
      %v1667 = vsel %vm296, %v1664, %v1666
      %v1668 = vrot.slane %v1635, 1
      %v1669 = vsel %vm296, %v1666, %v1668
      %v1670 = vrot.slane %v1636, 1
      %v1671 = vsel %vm296, %v1668, %v1670
      %v1672 = vrot.slane %v1625, 2
      %v1673 = vrot.slane %v1626, 2
      %v1674 = vsel %vm332, %v1672, %v1673
      %v1675 = vrot.slane %v1627, 2
      %v1676 = vsel %vm332, %v1673, %v1675
      %v1677 = vrot.slane %v1628, 2
      %v1678 = vsel %vm332, %v1675, %v1677
      %v1679 = vrot.slane %v1629, 2
      %v1680 = vsel %vm332, %v1677, %v1679
      %v1681 = vrot.slane %v1630, 2
      %v1682 = vsel %vm332, %v1679, %v1681
      %v1683 = vrot.slane %v1631, 2
      %v1684 = vsel %vm332, %v1681, %v1683
      %v1685 = vrot.slane %v1632, 2
      %v1686 = vsel %vm332, %v1683, %v1685
      %v1687 = vrot.slane %v1633, 2
      %v1688 = vsel %vm332, %v1685, %v1687
      %v1689 = vrot.slane %v1634, 2
      %v1690 = vsel %vm332, %v1687, %v1689
      %v1691 = vrot.slane %v1635, 2
      %v1692 = vsel %vm332, %v1689, %v1691
      %v1693 = vrot.slane %v1636, 2
      %v1694 = vsel %vm332, %v1691, %v1693
      %s1695 = scalar_lea.vmem %s1, 1152
      %v1696 = vld [vmem:[%s1695] sm:$0xff]
      %v1697 = vld [vmem:[%s1695 + $0x8] sm:$0xff]
      %v1698 = vld [vmem:[%s1695 + $0x10] sm:$0xff]
      %v1699 = vld [vmem:[%s1695 + $0x18] sm:$0xff]
      %v1700 = vld [vmem:[%s1695 + $0x20] sm:$0xff]
      %v1701 = vld [vmem:[%s1695 + $0x28] sm:$0xff]
      %v1702 = vld [vmem:[%s1695 + $0x30] sm:$0xff]
      %v1703 = vld [vmem:[%s1695 + $0x38] sm:$0xff]
      %v1704 = vld [vmem:[%s1695 + $0x40] sm:$0xff]
      %v1705 = vld [vmem:[%s1695 + $0x48] sm:$0xff]
      %v1706 = vld [vmem:[%s1695 + $0x50] sm:$0xff]
      %v1707 = vld [vmem:[%s1695 + $0x58] sm:$0xff]
      %v1708 = vld [vmem:[%s1695 + $0x60] sm:$0xff]
      %v1709 = vld [vmem:[%s1695 + $0x68] sm:$0xff]
      %v1710 = vld [vmem:[%s1695 + $0x70] sm:$0xff]
      %v1711 = vld [vmem:[%s1695 + $0x78] sm:$0xff]
      %v1712 = vld [vmem:[%s1695 + $0x80] sm:$0xff]
      %v1713 = vld [vmem:[%s1695 + $0x88] sm:$0xff]
      %v1714 = vld [vmem:[%s1695 + $0x90] sm:$0xff]
      %v1715 = vld [vmem:[%s1695 + $0x98] sm:$0xff]
      %v1716 = vld [vmem:[%s1695 + $0xa0] sm:$0xff]
      %v1717 = vld [vmem:[%s1695 + $0xa8] sm:$0xff]
      %v1718 = vld [vmem:[%s1695 + $0xb0] sm:$0xff]
      %v1719 = vld [vmem:[%s1695 + $0xb8] sm:$0xff]
      %v1720 = vld [vmem:[%s1695 + $0xc0] sm:$0xff]
      %v1721 = vld [vmem:[%s1695 + $0xc8] sm:$0xff]
      %v1722 = vld [vmem:[%s1695 + $0xd0] sm:$0xff]
      %v1723 = vld [vmem:[%s1695 + $0xd8] sm:$0xff]
      %v1724 = vld [vmem:[%s1695 + $0xe0] sm:$0xff]
      %v1725 = vld [vmem:[%s1695 + $0xe8] sm:$0xff]
      %v1726 = vld [vmem:[%s1695 + $0xf0] sm:$0xff]
      %v1727 = vld [vmem:[%s1695 + $0xf8] sm:$0xff]
      %v1728 = vld [vmem:[%s1695 + $0x100] sm:$0xff]
      %v1729 = vld [vmem:[%s1695 + $0x108] sm:$0xff]
      %v1730 = vld [vmem:[%s1695 + $0x110] sm:$0xff]
      %v1731 = vld [vmem:[%s1695 + $0x118] sm:$0xff]
      %v1732 = vld [vmem:[%s1695 + $0x120] sm:$0xff]
      %v1733 = vld [vmem:[%s1695 + $0x128] sm:$0xff]
      %v1734 = vld [vmem:[%s1695 + $0x130] sm:$0xff]
      %v1735 = vld [vmem:[%s1695 + $0x138] sm:$0xff]
      %v1736 = vld [vmem:[%s1695 + $0x140] sm:$0xff]
      %v1737 = vld [vmem:[%s1695 + $0x148] sm:$0xff]
      %v1738 = vld [vmem:[%s1695 + $0x150] sm:$0xff]
      %v1739 = vld [vmem:[%s1695 + $0x158] sm:$0xff]
      %v1740 = vld [vmem:[%s1695 + $0x160] sm:$0xff]
      %v1741 = vld [vmem:[%s1695 + $0x168] sm:$0xff]
      %v1742 = vld [vmem:[%s1695 + $0x170] sm:$0xff]
      %v1743 = vld [vmem:[%s1695 + $0x178] sm:$0xff]
      %v1744 = vld [vmem:[%s2 + $0x3] sm:$0x1]
      %v1745 = vperm.slane %v1744, 0
      %vm1746 = vcmask 1042432
      %v1747 = vrot.slane %v1625, 5
      %v1748 = vrot.slane %v1626, 5
      %v1749 = vsel %vm1746, %v1747, %v1748
      %v1750 = vrot.slane %v1651, 5
      %v1751 = vrot.slane %v1653, 5
      %v1752 = vsel %vm1746, %v1750, %v1751
      %v1753 = vrot.slane %v1674, 5
      %v1754 = vrot.slane %v1676, 5
      %v1755 = vsel %vm1746, %v1753, %v1754
      %v1756 = vrot.slane %v1627, 5
      %v1757 = vsel %vm1746, %v1748, %v1756
      %v1758 = vrot.slane %v1655, 5
      %v1759 = vsel %vm1746, %v1751, %v1758
      %v1760 = vrot.slane %v1678, 5
      %v1761 = vsel %vm1746, %v1754, %v1760
      %v1762 = vrot.slane %v1628, 5
      %v1763 = vsel %vm1746, %v1756, %v1762
      %v1764 = vrot.slane %v1657, 5
      %v1765 = vsel %vm1746, %v1758, %v1764
      %v1766 = vrot.slane %v1680, 5
      %v1767 = vsel %vm1746, %v1760, %v1766
      %v1768 = vrot.slane %v1629, 5
      %v1769 = vsel %vm1746, %v1762, %v1768
      %v1770 = vrot.slane %v1659, 5
      %v1771 = vsel %vm1746, %v1764, %v1770
      %v1772 = vrot.slane %v1682, 5
      %v1773 = vsel %vm1746, %v1766, %v1772
      %v1774 = vrot.slane %v1630, 5
      %v1775 = vsel %vm1746, %v1768, %v1774
      %v1776 = vrot.slane %v1661, 5
      %v1777 = vsel %vm1746, %v1770, %v1776
      %v1778 = vrot.slane %v1684, 5
      %v1779 = vsel %vm1746, %v1772, %v1778
      %v1780 = vrot.slane %v1631, 5
      %v1781 = vsel %vm1746, %v1774, %v1780
      %v1782 = vrot.slane %v1663, 5
      %v1783 = vsel %vm1746, %v1776, %v1782
      %v1784 = vrot.slane %v1686, 5
      %v1785 = vsel %vm1746, %v1778, %v1784
      %v1786 = vrot.slane %v1632, 5
      %v1787 = vsel %vm1746, %v1780, %v1786
      %v1788 = vrot.slane %v1665, 5
      %v1789 = vsel %vm1746, %v1782, %v1788
      %v1790 = vrot.slane %v1688, 5
      %v1791 = vsel %vm1746, %v1784, %v1790
      %v1792 = vrot.slane %v1633, 5
      %v1793 = vsel %vm1746, %v1786, %v1792
      %v1794 = vrot.slane %v1667, 5
      %v1795 = vsel %vm1746, %v1788, %v1794
      %v1796 = vrot.slane %v1690, 5
      %v1797 = vsel %vm1746, %v1790, %v1796
      %v1798 = vrot.slane %v1634, 5
      %v1799 = vsel %vm1746, %v1792, %v1798
      %v1800 = vrot.slane %v1669, 5
      %v1801 = vsel %vm1746, %v1794, %v1800
      %v1802 = vrot.slane %v1692, 5
      %v1803 = vsel %vm1746, %v1796, %v1802
      %v1804 = vrot.slane %v1635, 5
      %v1805 = vsel %vm1746, %v1798, %v1804
      %v1806 = vrot.slane %v1671, 5
      %v1807 = vsel %vm1746, %v1800, %v1806
      %v1808 = vrot.slane %v1694, 5
      %v1809 = vsel %vm1746, %v1802, %v1808
      %v1810 = vrot.slane %v1636, 5
      %v1811 = vsel %vm1746, %v1804, %v1810
      %v1812 = vrot.slane %v1670, 5
      %v1813 = vsel %vm1746, %v1806, %v1812
      %v1814 = vrot.slane %v1693, 5
      %v1815 = vsel %vm1746, %v1808, %v1814
      %1849 = vmatpush.msra.mxu0 %v1711
      %1850 = vmatpush.msra.mxu0 %v1710
      %1851 = vmatpush.msra.mxu0 %v1709
      %1852 = vmatpush.msra.mxu0 %v1708
      %1853 = vmatpush.msra.mxu0 %v1707
      %1854 = vmatpush.msra.mxu0 %v1706
      %1855 = vmatpush.msra.mxu0 %v1705
      %1856 = vmatpush.msra.mxu0 %v1704
      %1857 = vmatpush.msra.mxu0 %v1703
      %1858 = vmatpush.msra.mxu0 %v1702
      %1859 = vmatpush.msra.mxu0 %v1701
      %1860 = vmatpush.msra.mxu0 %v1700
      %1861 = vmatpush.msra.mxu0 %v1699
      %1862 = vmatpush.msra.mxu0 %v1698
      %1863 = vmatpush.msra.mxu0 %v1697
      %1864 = vmatpush.msra.mxu0 %v1696
      %1865 = vmatmul.f32.gmra.mxu0 %v1749
      %v1866 = vpop.f32.mrf.mxu0
      %v1867 = vadd.f32 %v1745, %v1866
      %1868 = vmatmul.f32.gmra.mxu0 %v1757
      %v1869 = vpop.f32.mrf.mxu0
      %v1870 = vadd.f32 %v1745, %v1869
      %1871 = vmatmul.f32.gmra.mxu0 %v1763
      %v1872 = vpop.f32.mrf.mxu0
      %v1873 = vadd.f32 %v1745, %v1872
      %1874 = vmatmul.f32.gmra.mxu0 %v1769
      %v1875 = vpop.f32.mrf.mxu0
      %v1876 = vadd.f32 %v1745, %v1875
      %1877 = vmatmul.f32.gmra.mxu0 %v1775
      %v1878 = vpop.f32.mrf.mxu0
      %v1879 = vadd.f32 %v1745, %v1878
      %1880 = vmatmul.f32.gmra.mxu0 %v1781
      %v1881 = vpop.f32.mrf.mxu0
      %v1882 = vadd.f32 %v1745, %v1881
      %1883 = vmatmul.f32.gmra.mxu0 %v1787
      %v1884 = vpop.f32.mrf.mxu0
      %v1885 = vadd.f32 %v1745, %v1884
      %1886 = vmatmul.f32.gmra.mxu0 %v1793
      %v1887 = vpop.f32.mrf.mxu0
      %v1888 = vadd.f32 %v1745, %v1887
      %1889 = vmatmul.f32.gmra.mxu0 %v1799
      %v1890 = vpop.f32.mrf.mxu0
      %v1891 = vadd.f32 %v1745, %v1890
      %1892 = vmatmul.f32.gmra.mxu0 %v1805
      %v1893 = vpop.f32.mrf.mxu0
      %v1894 = vadd.f32 %v1745, %v1893
      %1895 = vmatmul.f32.gmra.mxu0 %v1811
      %v1896 = vpop.f32.mrf.mxu0
      %v1897 = vadd.f32 %v1745, %v1896
      %1898 = vdwg.mxu0
      %1899 = vmatpush.msra.mxu0 %v1727
      %1900 = vmatpush.msra.mxu0 %v1726
      %1901 = vmatpush.msra.mxu0 %v1725
      %1902 = vmatpush.msra.mxu0 %v1724
      %1903 = vmatpush.msra.mxu0 %v1723
      %1904 = vmatpush.msra.mxu0 %v1722
      %1905 = vmatpush.msra.mxu0 %v1721
      %1906 = vmatpush.msra.mxu0 %v1720
      %1907 = vmatpush.msra.mxu0 %v1719
      %1908 = vmatpush.msra.mxu0 %v1718
      %1909 = vmatpush.msra.mxu0 %v1717
      %1910 = vmatpush.msra.mxu0 %v1716
      %1911 = vmatpush.msra.mxu0 %v1715
      %1912 = vmatpush.msra.mxu0 %v1714
      %1913 = vmatpush.msra.mxu0 %v1713
      %1914 = vmatpush.msra.mxu0 %v1712
      %1915 = vmatmul.f32.gmra.mxu0 %v1752
      %v1916 = vpop.f32.mrf.mxu0
      %v1917 = vadd.f32 %v1867, %v1916
      %1918 = vmatmul.f32.gmra.mxu0 %v1759
      %v1919 = vpop.f32.mrf.mxu0
      %v1920 = vadd.f32 %v1870, %v1919
      %1921 = vmatmul.f32.gmra.mxu0 %v1765
      %v1922 = vpop.f32.mrf.mxu0
      %v1923 = vadd.f32 %v1873, %v1922
      %1924 = vmatmul.f32.gmra.mxu0 %v1771
      %v1925 = vpop.f32.mrf.mxu0
      %v1926 = vadd.f32 %v1876, %v1925
      %1927 = vmatmul.f32.gmra.mxu0 %v1777
      %v1928 = vpop.f32.mrf.mxu0
      %v1929 = vadd.f32 %v1879, %v1928
      %1930 = vmatmul.f32.gmra.mxu0 %v1783
      %v1931 = vpop.f32.mrf.mxu0
      %v1932 = vadd.f32 %v1882, %v1931
      %1933 = vmatmul.f32.gmra.mxu0 %v1789
      %v1934 = vpop.f32.mrf.mxu0
      %v1935 = vadd.f32 %v1885, %v1934
      %1936 = vmatmul.f32.gmra.mxu0 %v1795
      %v1937 = vpop.f32.mrf.mxu0
      %v1938 = vadd.f32 %v1888, %v1937
      %1939 = vmatmul.f32.gmra.mxu0 %v1801
      %v1940 = vpop.f32.mrf.mxu0
      %v1941 = vadd.f32 %v1891, %v1940
      %1942 = vmatmul.f32.gmra.mxu0 %v1807
      %v1943 = vpop.f32.mrf.mxu0
      %v1944 = vadd.f32 %v1894, %v1943
      %1945 = vmatmul.f32.gmra.mxu0 %v1813
      %v1946 = vpop.f32.mrf.mxu0
      %v1947 = vadd.f32 %v1897, %v1946
      %1948 = vdwg.mxu0
      %1949 = vmatpush.msra.mxu0 %v1743
      %1950 = vmatpush.msra.mxu0 %v1742
      %1951 = vmatpush.msra.mxu0 %v1741
      %1952 = vmatpush.msra.mxu0 %v1740
      %1953 = vmatpush.msra.mxu0 %v1739
      %1954 = vmatpush.msra.mxu0 %v1738
      %1955 = vmatpush.msra.mxu0 %v1737
      %1956 = vmatpush.msra.mxu0 %v1736
      %1957 = vmatpush.msra.mxu0 %v1735
      %1958 = vmatpush.msra.mxu0 %v1734
      %1959 = vmatpush.msra.mxu0 %v1733
      %1960 = vmatpush.msra.mxu0 %v1732
      %1961 = vmatpush.msra.mxu0 %v1731
      %1962 = vmatpush.msra.mxu0 %v1730
      %1963 = vmatpush.msra.mxu0 %v1729
      %1964 = vmatpush.msra.mxu0 %v1728
      %1965 = vmatmul.f32.gmra.mxu0 %v1755
      %v1966 = vpop.f32.mrf.mxu0
      %v1967 = vadd.f32 %v1917, %v1966
      %1968 = vmatmul.f32.gmra.mxu0 %v1761
      %v1969 = vpop.f32.mrf.mxu0
      %v1970 = vadd.f32 %v1920, %v1969
      %1971 = vmatmul.f32.gmra.mxu0 %v1767
      %v1972 = vpop.f32.mrf.mxu0
      %v1973 = vadd.f32 %v1923, %v1972
      %1974 = vmatmul.f32.gmra.mxu0 %v1773
      %v1975 = vpop.f32.mrf.mxu0
      %v1976 = vadd.f32 %v1926, %v1975
      %1977 = vmatmul.f32.gmra.mxu0 %v1779
      %v1978 = vpop.f32.mrf.mxu0
      %v1979 = vadd.f32 %v1929, %v1978
      %1980 = vmatmul.f32.gmra.mxu0 %v1785
      %v1981 = vpop.f32.mrf.mxu0
      %v1982 = vadd.f32 %v1932, %v1981
      %1983 = vmatmul.f32.gmra.mxu0 %v1791
      %v1984 = vpop.f32.mrf.mxu0
      %v1985 = vadd.f32 %v1935, %v1984
      %1986 = vmatmul.f32.gmra.mxu0 %v1797
      %v1987 = vpop.f32.mrf.mxu0
      %v1988 = vadd.f32 %v1938, %v1987
      %1989 = vmatmul.f32.gmra.mxu0 %v1803
      %v1990 = vpop.f32.mrf.mxu0
      %v1991 = vadd.f32 %v1941, %v1990
      %1992 = vmatmul.f32.gmra.mxu0 %v1809
      %v1993 = vpop.f32.mrf.mxu0
      %v1994 = vadd.f32 %v1944, %v1993
      %1995 = vmatmul.f32.gmra.mxu0 %v1815
      %v1996 = vpop.f32.mrf.mxu0
      %v1997 = vadd.f32 %v1947, %v1996
      %1998 = vdwg.mxu0
      %v2010 = vrot.slane %v1967, 2
      %v2011 = vrot.slane %v1970, 2
      %v2012 = vsel %vm332, %v2010, %v2011
      %v2013 = vrot.slane %v1973, 2
      %v2014 = vsel %vm332, %v2011, %v2013
      %v2015 = vrot.slane %v1976, 2
      %v2016 = vsel %vm332, %v2013, %v2015
      %v2017 = vrot.slane %v1979, 2
      %v2018 = vsel %vm332, %v2015, %v2017
      %v2019 = vrot.slane %v1982, 2
      %v2020 = vsel %vm332, %v2017, %v2019
      %v2021 = vrot.slane %v1985, 2
      %v2022 = vsel %vm332, %v2019, %v2021
      %v2023 = vrot.slane %v1988, 2
      %v2024 = vsel %vm332, %v2021, %v2023
      %v2025 = vrot.slane %v1991, 2
      %v2026 = vsel %vm332, %v2023, %v2025
      %v2027 = vrot.slane %v1994, 2
      %v2028 = vsel %vm332, %v2025, %v2027
      %v2029 = vrot.slane %v1997, 2
      %v2030 = vsel %vm332, %v2027, %v2029
      %v2043 = vsel %vm625, %v2010, 0.0
      %v2044 = vsel %vm626, %v2012, 0.0
      %v2045 = vsel %vm627, %v2014, 0.0
      %v2046 = vsel %vm628, %v2016, 0.0
      %v2047 = vsel %vm629, %v2018, 0.0
      %v2048 = vsel %vm630, %v2020, 0.0
      %v2049 = vsel %vm631, %v2022, 0.0
      %v2050 = vsel %vm632, %v2024, 0.0
      %v2051 = vsel %vm633, %v2026, 0.0
      %v2052 = vsel %vm634, %v2028, 0.0
      %v2053 = vsel %vm635, %v2030, 0.0
      %v2054 = vsel %vm636, %v2029, 0.0
      %v2055 = vadd.f32 %v2043, %v1143
      %v2056 = vadd.f32 %v2044, %v1144
      %v2057 = vadd.f32 %v2045, %v1145
      %v2058 = vadd.f32 %v2046, %v1146
      %v2059 = vadd.f32 %v2047, %v1147
      %v2060 = vadd.f32 %v2048, %v1148
      %v2061 = vadd.f32 %v2049, %v1149
      %v2062 = vadd.f32 %v2050, %v1150
      %v2063 = vadd.f32 %v2051, %v1151
      %v2064 = vadd.f32 %v2052, %v1152
      %v2065 = vadd.f32 %v2053, %v1153
      %v2066 = vadd.f32 %v2054, %v1154
      %vm2067 = vcmp.ge.f32.partialorder %v2055, 0.0
      %vm2068 = vcmp.ge.f32.partialorder %v2056, 0.0
      %vm2069 = vcmp.ge.f32.partialorder %v2057, 0.0
      %vm2070 = vcmp.ge.f32.partialorder %v2058, 0.0
      %vm2071 = vcmp.ge.f32.partialorder %v2059, 0.0
      %vm2072 = vcmp.ge.f32.partialorder %v2060, 0.0
      %vm2073 = vcmp.ge.f32.partialorder %v2061, 0.0
      %vm2074 = vcmp.ge.f32.partialorder %v2062, 0.0
      %vm2075 = vcmp.ge.f32.partialorder %v2063, 0.0
      %vm2076 = vcmp.ge.f32.partialorder %v2064, 0.0
      %vm2077 = vcmp.ge.f32.partialorder %v2065, 0.0
      %vm2078 = vcmp.ge.f32.partialorder %v2066, 0.0
      %v2079 = vmul.f32 %v2055, 0.1
      %v2080 = vmul.f32 %v2056, 0.1
      %v2081 = vmul.f32 %v2057, 0.1
      %v2082 = vmul.f32 %v2058, 0.1
      %v2083 = vmul.f32 %v2059, 0.1
      %v2084 = vmul.f32 %v2060, 0.1
      %v2085 = vmul.f32 %v2061, 0.1
      %v2086 = vmul.f32 %v2062, 0.1
      %v2087 = vmul.f32 %v2063, 0.1
      %v2088 = vmul.f32 %v2064, 0.1
      %v2089 = vmul.f32 %v2065, 0.1
      %v2090 = vmul.f32 %v2066, 0.1
      %v2091 = vsel %vm2067, %v2055, %v2079
      %v2092 = vsel %vm2068, %v2056, %v2080
      %v2093 = vsel %vm2069, %v2057, %v2081
      %v2094 = vsel %vm2070, %v2058, %v2082
      %v2095 = vsel %vm2071, %v2059, %v2083
      %v2096 = vsel %vm2072, %v2060, %v2084
      %v2097 = vsel %vm2073, %v2061, %v2085
      %v2098 = vsel %vm2074, %v2062, %v2086
      %v2099 = vsel %vm2075, %v2063, %v2087
      %v2100 = vsel %vm2076, %v2064, %v2088
      %v2101 = vsel %vm2077, %v2065, %v2089
      %v2102 = vsel %vm2078, %v2066, %v2090
      %v2113 = vrot.slane %v2092, 5
      %v2114 = vrot.slane %v2093, 5
      %v2115 = vsel %vm1746, %v2113, %v2114
      %v2116 = vrot.slane %v2094, 5
      %v2117 = vsel %vm1746, %v2114, %v2116
      %v2118 = vrot.slane %v2095, 5
      %v2119 = vsel %vm1746, %v2116, %v2118
      %v2120 = vrot.slane %v2096, 5
      %v2121 = vsel %vm1746, %v2118, %v2120
      %v2122 = vrot.slane %v2097, 5
      %v2123 = vsel %vm1746, %v2120, %v2122
      %v2124 = vrot.slane %v2098, 5
      %v2125 = vsel %vm1746, %v2122, %v2124
      %v2126 = vrot.slane %v2099, 5
      %v2127 = vsel %vm1746, %v2124, %v2126
      %v2128 = vrot.slane %v2100, 5
      %v2129 = vsel %vm1746, %v2126, %v2128
      %v2130 = vrot.slane %v2101, 5
      %v2131 = vsel %vm1746, %v2128, %v2130
      %v2133 = vrot.slane %v2093, 2
      %v2134 = vrot.slane %v2094, 2
      %v2135 = vsel %vm332, %v2133, %v2134
      %v2136 = vrot.slane %v2095, 2
      %v2137 = vsel %vm332, %v2134, %v2136
      %v2138 = vrot.slane %v2096, 2
      %v2139 = vsel %vm332, %v2136, %v2138
      %v2140 = vrot.slane %v2097, 2
      %v2141 = vsel %vm332, %v2138, %v2140
      %v2142 = vrot.slane %v2098, 2
      %v2143 = vsel %vm332, %v2140, %v2142
      %v2144 = vrot.slane %v2099, 2
      %v2145 = vsel %vm332, %v2142, %v2144
      %v2146 = vrot.slane %v2100, 2
      %v2147 = vsel %vm332, %v2144, %v2146
      %v2148 = vrot.slane %v2101, 2
      %v2149 = vsel %vm332, %v2146, %v2148
      %v2150 = vrot.slane %v2102, 2
      %v2151 = vsel %vm332, %v2148, %v2150
      %s2152 = scalar_lea.vmem %s1, 1536
      %v2153 = vld [vmem:[%s2152] sm:$0xff]
      %v2154 = vld [vmem:[%s2152 + $0x8] sm:$0xff]
      %v2155 = vld [vmem:[%s2152 + $0x10] sm:$0xff]
      %v2156 = vld [vmem:[%s2152 + $0x18] sm:$0xff]
      %v2157 = vld [vmem:[%s2152 + $0x20] sm:$0xff]
      %v2158 = vld [vmem:[%s2152 + $0x28] sm:$0xff]
      %v2159 = vld [vmem:[%s2152 + $0x30] sm:$0xff]
      %v2160 = vld [vmem:[%s2152 + $0x38] sm:$0xff]
      %v2161 = vld [vmem:[%s2152 + $0x40] sm:$0xff]
      %v2162 = vld [vmem:[%s2152 + $0x48] sm:$0xff]
      %v2163 = vld [vmem:[%s2152 + $0x50] sm:$0xff]
      %v2164 = vld [vmem:[%s2152 + $0x58] sm:$0xff]
      %v2165 = vld [vmem:[%s2152 + $0x60] sm:$0xff]
      %v2166 = vld [vmem:[%s2152 + $0x68] sm:$0xff]
      %v2167 = vld [vmem:[%s2152 + $0x70] sm:$0xff]
      %v2168 = vld [vmem:[%s2152 + $0x78] sm:$0xff]
      %v2169 = vld [vmem:[%s2152 + $0x80] sm:$0xff]
      %v2170 = vld [vmem:[%s2152 + $0x88] sm:$0xff]
      %v2171 = vld [vmem:[%s2152 + $0x90] sm:$0xff]
      %v2172 = vld [vmem:[%s2152 + $0x98] sm:$0xff]
      %v2173 = vld [vmem:[%s2152 + $0xa0] sm:$0xff]
      %v2174 = vld [vmem:[%s2152 + $0xa8] sm:$0xff]
      %v2175 = vld [vmem:[%s2152 + $0xb0] sm:$0xff]
      %v2176 = vld [vmem:[%s2152 + $0xb8] sm:$0xff]
      %v2177 = vld [vmem:[%s2152 + $0xc0] sm:$0xff]
      %v2178 = vld [vmem:[%s2152 + $0xc8] sm:$0xff]
      %v2179 = vld [vmem:[%s2152 + $0xd0] sm:$0xff]
      %v2180 = vld [vmem:[%s2152 + $0xd8] sm:$0xff]
      %v2181 = vld [vmem:[%s2152 + $0xe0] sm:$0xff]
      %v2182 = vld [vmem:[%s2152 + $0xe8] sm:$0xff]
      %v2183 = vld [vmem:[%s2152 + $0xf0] sm:$0xff]
      %v2184 = vld [vmem:[%s2152 + $0xf8] sm:$0xff]
      %v2185 = vld [vmem:[%s2152 + $0x100] sm:$0xff]
      %v2186 = vld [vmem:[%s2152 + $0x108] sm:$0xff]
      %v2187 = vld [vmem:[%s2152 + $0x110] sm:$0xff]
      %v2188 = vld [vmem:[%s2152 + $0x118] sm:$0xff]
      %v2189 = vld [vmem:[%s2152 + $0x120] sm:$0xff]
      %v2190 = vld [vmem:[%s2152 + $0x128] sm:$0xff]
      %v2191 = vld [vmem:[%s2152 + $0x130] sm:$0xff]
      %v2192 = vld [vmem:[%s2152 + $0x138] sm:$0xff]
      %v2193 = vld [vmem:[%s2152 + $0x140] sm:$0xff]
      %v2194 = vld [vmem:[%s2152 + $0x148] sm:$0xff]
      %v2195 = vld [vmem:[%s2152 + $0x150] sm:$0xff]
      %v2196 = vld [vmem:[%s2152 + $0x158] sm:$0xff]
      %v2197 = vld [vmem:[%s2152 + $0x160] sm:$0xff]
      %v2198 = vld [vmem:[%s2152 + $0x168] sm:$0xff]
      %v2199 = vld [vmem:[%s2152 + $0x170] sm:$0xff]
      %v2200 = vld [vmem:[%s2152 + $0x178] sm:$0xff]
      %v2201 = vld [vmem:[%s2 + $0x4] sm:$0x1]
      %v2202 = vperm.slane %v2201, 0
      %v2204 = vrot.slane %v2091, 6
      %v2205 = vrot.slane %v2092, 6
      %v2206 = vsel %vm1095, %v2204, %v2205
      %v2207 = vrot.slane %v2113, 6
      %v2208 = vrot.slane %v2115, 6
      %v2209 = vsel %vm1095, %v2207, %v2208
      %v2210 = vrot.slane %v2133, 6
      %v2211 = vrot.slane %v2135, 6
      %v2212 = vsel %vm1095, %v2210, %v2211
      %v2213 = vrot.slane %v2093, 6
      %v2214 = vsel %vm1095, %v2205, %v2213
      %v2215 = vrot.slane %v2117, 6
      %v2216 = vsel %vm1095, %v2208, %v2215
      %v2217 = vrot.slane %v2137, 6
      %v2218 = vsel %vm1095, %v2211, %v2217
      %v2219 = vrot.slane %v2094, 6
      %v2220 = vsel %vm1095, %v2213, %v2219
      %v2221 = vrot.slane %v2119, 6
      %v2222 = vsel %vm1095, %v2215, %v2221
      %v2223 = vrot.slane %v2139, 6
      %v2224 = vsel %vm1095, %v2217, %v2223
      %v2225 = vrot.slane %v2095, 6
      %v2226 = vsel %vm1095, %v2219, %v2225
      %v2227 = vrot.slane %v2121, 6
      %v2228 = vsel %vm1095, %v2221, %v2227
      %v2229 = vrot.slane %v2141, 6
      %v2230 = vsel %vm1095, %v2223, %v2229
      %v2231 = vrot.slane %v2096, 6
      %v2232 = vsel %vm1095, %v2225, %v2231
      %v2233 = vrot.slane %v2123, 6
      %v2234 = vsel %vm1095, %v2227, %v2233
      %v2235 = vrot.slane %v2143, 6
      %v2236 = vsel %vm1095, %v2229, %v2235
      %v2237 = vrot.slane %v2097, 6
      %v2238 = vsel %vm1095, %v2231, %v2237
      %v2239 = vrot.slane %v2125, 6
      %v2240 = vsel %vm1095, %v2233, %v2239
      %v2241 = vrot.slane %v2145, 6
      %v2242 = vsel %vm1095, %v2235, %v2241
      %v2243 = vrot.slane %v2098, 6
      %v2244 = vsel %vm1095, %v2237, %v2243
      %v2245 = vrot.slane %v2127, 6
      %v2246 = vsel %vm1095, %v2239, %v2245
      %v2247 = vrot.slane %v2147, 6
      %v2248 = vsel %vm1095, %v2241, %v2247
      %v2249 = vrot.slane %v2099, 6
      %v2250 = vsel %vm1095, %v2243, %v2249
      %v2251 = vrot.slane %v2129, 6
      %v2252 = vsel %vm1095, %v2245, %v2251
      %v2253 = vrot.slane %v2149, 6
      %v2254 = vsel %vm1095, %v2247, %v2253
      %v2255 = vrot.slane %v2100, 6
      %v2256 = vsel %vm1095, %v2249, %v2255
      %v2257 = vrot.slane %v2131, 6
      %v2258 = vsel %vm1095, %v2251, %v2257
      %v2259 = vrot.slane %v2151, 6
      %v2260 = vsel %vm1095, %v2253, %v2259
      %2291 = vmatpush.msra.mxu0 %v2168
      %2292 = vmatpush.msra.mxu0 %v2167
      %2293 = vmatpush.msra.mxu0 %v2166
      %2294 = vmatpush.msra.mxu0 %v2165
      %2295 = vmatpush.msra.mxu0 %v2164
      %2296 = vmatpush.msra.mxu0 %v2163
      %2297 = vmatpush.msra.mxu0 %v2162
      %2298 = vmatpush.msra.mxu0 %v2161
      %2299 = vmatpush.msra.mxu0 %v2160
      %2300 = vmatpush.msra.mxu0 %v2159
      %2301 = vmatpush.msra.mxu0 %v2158
      %2302 = vmatpush.msra.mxu0 %v2157
      %2303 = vmatpush.msra.mxu0 %v2156
      %2304 = vmatpush.msra.mxu0 %v2155
      %2305 = vmatpush.msra.mxu0 %v2154
      %2306 = vmatpush.msra.mxu0 %v2153
      %2307 = vmatmul.f32.gmra.mxu0 %v2206
      %v2308 = vpop.f32.mrf.mxu0
      %v2309 = vadd.f32 %v2202, %v2308
      %2310 = vmatmul.f32.gmra.mxu0 %v2214
      %v2311 = vpop.f32.mrf.mxu0
      %v2312 = vadd.f32 %v2202, %v2311
      %2313 = vmatmul.f32.gmra.mxu0 %v2220
      %v2314 = vpop.f32.mrf.mxu0
      %v2315 = vadd.f32 %v2202, %v2314
      %2316 = vmatmul.f32.gmra.mxu0 %v2226
      %v2317 = vpop.f32.mrf.mxu0
      %v2318 = vadd.f32 %v2202, %v2317
      %2319 = vmatmul.f32.gmra.mxu0 %v2232
      %v2320 = vpop.f32.mrf.mxu0
      %v2321 = vadd.f32 %v2202, %v2320
      %2322 = vmatmul.f32.gmra.mxu0 %v2238
      %v2323 = vpop.f32.mrf.mxu0
      %v2324 = vadd.f32 %v2202, %v2323
      %2325 = vmatmul.f32.gmra.mxu0 %v2244
      %v2326 = vpop.f32.mrf.mxu0
      %v2327 = vadd.f32 %v2202, %v2326
      %2328 = vmatmul.f32.gmra.mxu0 %v2250
      %v2329 = vpop.f32.mrf.mxu0
      %v2330 = vadd.f32 %v2202, %v2329
      %2331 = vmatmul.f32.gmra.mxu0 %v2256
      %v2332 = vpop.f32.mrf.mxu0
      %v2333 = vadd.f32 %v2202, %v2332
      %2334 = vmatmul.f32.gmra.mxu0 %v2255
      %v2335 = vpop.f32.mrf.mxu0
      %v2336 = vadd.f32 %v2202, %v2335
      %2337 = vdwg.mxu0
      %2338 = vmatpush.msra.mxu0 %v2184
      %2339 = vmatpush.msra.mxu0 %v2183
      %2340 = vmatpush.msra.mxu0 %v2182
      %2341 = vmatpush.msra.mxu0 %v2181
      %2342 = vmatpush.msra.mxu0 %v2180
      %2343 = vmatpush.msra.mxu0 %v2179
      %2344 = vmatpush.msra.mxu0 %v2178
      %2345 = vmatpush.msra.mxu0 %v2177
      %2346 = vmatpush.msra.mxu0 %v2176
      %2347 = vmatpush.msra.mxu0 %v2175
      %2348 = vmatpush.msra.mxu0 %v2174
      %2349 = vmatpush.msra.mxu0 %v2173
      %2350 = vmatpush.msra.mxu0 %v2172
      %2351 = vmatpush.msra.mxu0 %v2171
      %2352 = vmatpush.msra.mxu0 %v2170
      %2353 = vmatpush.msra.mxu0 %v2169
      %2354 = vmatmul.f32.gmra.mxu0 %v2209
      %v2355 = vpop.f32.mrf.mxu0
      %v2356 = vadd.f32 %v2309, %v2355
      %2357 = vmatmul.f32.gmra.mxu0 %v2216
      %v2358 = vpop.f32.mrf.mxu0
      %v2359 = vadd.f32 %v2312, %v2358
      %2360 = vmatmul.f32.gmra.mxu0 %v2222
      %v2361 = vpop.f32.mrf.mxu0
      %v2362 = vadd.f32 %v2315, %v2361
      %2363 = vmatmul.f32.gmra.mxu0 %v2228
      %v2364 = vpop.f32.mrf.mxu0
      %v2365 = vadd.f32 %v2318, %v2364
      %2366 = vmatmul.f32.gmra.mxu0 %v2234
      %v2367 = vpop.f32.mrf.mxu0
      %v2368 = vadd.f32 %v2321, %v2367
      %2369 = vmatmul.f32.gmra.mxu0 %v2240
      %v2370 = vpop.f32.mrf.mxu0
      %v2371 = vadd.f32 %v2324, %v2370
      %2372 = vmatmul.f32.gmra.mxu0 %v2246
      %v2373 = vpop.f32.mrf.mxu0
      %v2374 = vadd.f32 %v2327, %v2373
      %2375 = vmatmul.f32.gmra.mxu0 %v2252
      %v2376 = vpop.f32.mrf.mxu0
      %v2377 = vadd.f32 %v2330, %v2376
      %2378 = vmatmul.f32.gmra.mxu0 %v2258
      %v2379 = vpop.f32.mrf.mxu0
      %v2380 = vadd.f32 %v2333, %v2379
      %2381 = vmatmul.f32.gmra.mxu0 %v2257
      %v2382 = vpop.f32.mrf.mxu0
      %v2383 = vadd.f32 %v2336, %v2382
      %2384 = vdwg.mxu0
      %2385 = vmatpush.msra.mxu0 %v2200
      %2386 = vmatpush.msra.mxu0 %v2199
      %2387 = vmatpush.msra.mxu0 %v2198
      %2388 = vmatpush.msra.mxu0 %v2197
      %2389 = vmatpush.msra.mxu0 %v2196
      %2390 = vmatpush.msra.mxu0 %v2195
      %2391 = vmatpush.msra.mxu0 %v2194
      %2392 = vmatpush.msra.mxu0 %v2193
      %2393 = vmatpush.msra.mxu0 %v2192
      %2394 = vmatpush.msra.mxu0 %v2191
      %2395 = vmatpush.msra.mxu0 %v2190
      %2396 = vmatpush.msra.mxu0 %v2189
      %2397 = vmatpush.msra.mxu0 %v2188
      %2398 = vmatpush.msra.mxu0 %v2187
      %2399 = vmatpush.msra.mxu0 %v2186
      %2400 = vmatpush.msra.mxu0 %v2185
      %2401 = vmatmul.f32.gmra.mxu0 %v2212
      %v2402 = vpop.f32.mrf.mxu0
      %v2403 = vadd.f32 %v2356, %v2402
      %2404 = vmatmul.f32.gmra.mxu0 %v2218
      %v2405 = vpop.f32.mrf.mxu0
      %v2406 = vadd.f32 %v2359, %v2405
      %2407 = vmatmul.f32.gmra.mxu0 %v2224
      %v2408 = vpop.f32.mrf.mxu0
      %v2409 = vadd.f32 %v2362, %v2408
      %2410 = vmatmul.f32.gmra.mxu0 %v2230
      %v2411 = vpop.f32.mrf.mxu0
      %v2412 = vadd.f32 %v2365, %v2411
      %2413 = vmatmul.f32.gmra.mxu0 %v2236
      %v2414 = vpop.f32.mrf.mxu0
      %v2415 = vadd.f32 %v2368, %v2414
      %2416 = vmatmul.f32.gmra.mxu0 %v2242
      %v2417 = vpop.f32.mrf.mxu0
      %v2418 = vadd.f32 %v2371, %v2417
      %2419 = vmatmul.f32.gmra.mxu0 %v2248
      %v2420 = vpop.f32.mrf.mxu0
      %v2421 = vadd.f32 %v2374, %v2420
      %2422 = vmatmul.f32.gmra.mxu0 %v2254
      %v2423 = vpop.f32.mrf.mxu0
      %v2424 = vadd.f32 %v2377, %v2423
      %2425 = vmatmul.f32.gmra.mxu0 %v2260
      %v2426 = vpop.f32.mrf.mxu0
      %v2427 = vadd.f32 %v2380, %v2426
      %2428 = vmatmul.f32.gmra.mxu0 %v2259
      %v2429 = vpop.f32.mrf.mxu0
      %v2430 = vadd.f32 %v2383, %v2429
      %2431 = vdwg.mxu0
      %v2442 = vrot.slane %v2403, 5
      %v2443 = vrot.slane %v2406, 5
      %v2444 = vsel %vm1746, %v2442, %v2443
      %v2445 = vrot.slane %v2409, 5
      %v2446 = vsel %vm1746, %v2443, %v2445
      %v2447 = vrot.slane %v2412, 5
      %v2448 = vsel %vm1746, %v2445, %v2447
      %v2449 = vrot.slane %v2415, 5
      %v2450 = vsel %vm1746, %v2447, %v2449
      %v2451 = vrot.slane %v2418, 5
      %v2452 = vsel %vm1746, %v2449, %v2451
      %v2453 = vrot.slane %v2421, 5
      %v2454 = vsel %vm1746, %v2451, %v2453
      %v2455 = vrot.slane %v2424, 5
      %v2456 = vsel %vm1746, %v2453, %v2455
      %v2457 = vrot.slane %v2427, 5
      %v2458 = vsel %vm1746, %v2455, %v2457
      %v2459 = vrot.slane %v2430, 5
      %v2460 = vsel %vm1746, %v2457, %v2459
      %v2471 = vsel %vm626, %v2442, 0.0
      %v2472 = vsel %vm627, %v2444, 0.0
      %v2473 = vsel %vm628, %v2446, 0.0
      %v2474 = vsel %vm629, %v2448, 0.0
      %v2475 = vsel %vm630, %v2450, 0.0
      %v2476 = vsel %vm631, %v2452, 0.0
      %v2477 = vsel %vm632, %v2454, 0.0
      %v2478 = vsel %vm633, %v2456, 0.0
      %v2479 = vsel %vm634, %v2458, 0.0
      %v2480 = vsel %vm635, %v2460, 0.0
      %vm2481 = vcmp.ge.f32.partialorder %v2471, 0.0
      %vm2482 = vcmp.ge.f32.partialorder %v2472, 0.0
      %vm2483 = vcmp.ge.f32.partialorder %v2473, 0.0
      %vm2484 = vcmp.ge.f32.partialorder %v2474, 0.0
      %vm2485 = vcmp.ge.f32.partialorder %v2475, 0.0
      %vm2486 = vcmp.ge.f32.partialorder %v2476, 0.0
      %vm2487 = vcmp.ge.f32.partialorder %v2477, 0.0
      %vm2488 = vcmp.ge.f32.partialorder %v2478, 0.0
      %vm2489 = vcmp.ge.f32.partialorder %v2479, 0.0
      %vm2490 = vcmp.ge.f32.partialorder %v2480, 0.0
      %v2491 = vmul.f32 %v2471, 0.1
      %v2492 = vmul.f32 %v2472, 0.1
      %v2493 = vmul.f32 %v2473, 0.1
      %v2494 = vmul.f32 %v2474, 0.1
      %v2495 = vmul.f32 %v2475, 0.1
      %v2496 = vmul.f32 %v2476, 0.1
      %v2497 = vmul.f32 %v2477, 0.1
      %v2498 = vmul.f32 %v2478, 0.1
      %v2499 = vmul.f32 %v2479, 0.1
      %v2500 = vmul.f32 %v2480, 0.1
      %v2501 = vsel %vm2481, %v2471, %v2491
      %v2502 = vsel %vm2482, %v2472, %v2492
      %v2503 = vsel %vm2483, %v2473, %v2493
      %v2504 = vsel %vm2484, %v2474, %v2494
      %v2505 = vsel %vm2485, %v2475, %v2495
      %v2506 = vsel %vm2486, %v2476, %v2496
      %v2507 = vsel %vm2487, %v2477, %v2497
      %v2508 = vsel %vm2488, %v2478, %v2498
      %v2509 = vsel %vm2489, %v2479, %v2499
      %v2510 = vsel %vm2490, %v2480, %v2500
      %v2521 = vrot.slane %v2501, 1
      %v2522 = vrot.slane %v2502, 1
      %v2523 = vsel %vm296, %v2521, %v2522
      %v2524 = vrot.slane %v2503, 1
      %v2525 = vsel %vm296, %v2522, %v2524
      %v2526 = vrot.slane %v2504, 1
      %v2527 = vsel %vm296, %v2524, %v2526
      %v2528 = vrot.slane %v2505, 1
      %v2529 = vsel %vm296, %v2526, %v2528
      %v2530 = vrot.slane %v2506, 1
      %v2531 = vsel %vm296, %v2528, %v2530
      %v2532 = vrot.slane %v2507, 1
      %v2533 = vsel %vm296, %v2530, %v2532
      %v2534 = vrot.slane %v2508, 1
      %v2535 = vsel %vm296, %v2532, %v2534
      %v2536 = vrot.slane %v2509, 1
      %v2537 = vsel %vm296, %v2534, %v2536
      %v2538 = vrot.slane %v2510, 1
      %v2539 = vsel %vm296, %v2536, %v2538
      %v2540 = vrot.slane %v2501, 2
      %v2541 = vrot.slane %v2502, 2
      %v2542 = vsel %vm332, %v2540, %v2541
      %v2543 = vrot.slane %v2503, 2
      %v2544 = vsel %vm332, %v2541, %v2543
      %v2545 = vrot.slane %v2504, 2
      %v2546 = vsel %vm332, %v2543, %v2545
      %v2547 = vrot.slane %v2505, 2
      %v2548 = vsel %vm332, %v2545, %v2547
      %v2549 = vrot.slane %v2506, 2
      %v2550 = vsel %vm332, %v2547, %v2549
      %v2551 = vrot.slane %v2507, 2
      %v2552 = vsel %vm332, %v2549, %v2551
      %v2553 = vrot.slane %v2508, 2
      %v2554 = vsel %vm332, %v2551, %v2553
      %v2555 = vrot.slane %v2509, 2
      %v2556 = vsel %vm332, %v2553, %v2555
      %v2557 = vrot.slane %v2510, 2
      %v2558 = vsel %vm332, %v2555, %v2557
      %s2559 = scalar_lea.vmem %s1, 1920
      %v2560 = vld [vmem:[%s2559] sm:$0xff]
      %v2561 = vld [vmem:[%s2559 + $0x8] sm:$0xff]
      %v2562 = vld [vmem:[%s2559 + $0x10] sm:$0xff]
      %v2563 = vld [vmem:[%s2559 + $0x18] sm:$0xff]
      %v2564 = vld [vmem:[%s2559 + $0x20] sm:$0xff]
      %v2565 = vld [vmem:[%s2559 + $0x28] sm:$0xff]
      %v2566 = vld [vmem:[%s2559 + $0x30] sm:$0xff]
      %v2567 = vld [vmem:[%s2559 + $0x38] sm:$0xff]
      %v2568 = vld [vmem:[%s2559 + $0x40] sm:$0xff]
      %v2569 = vld [vmem:[%s2559 + $0x48] sm:$0xff]
      %v2570 = vld [vmem:[%s2559 + $0x50] sm:$0xff]
      %v2571 = vld [vmem:[%s2559 + $0x58] sm:$0xff]
      %v2572 = vld [vmem:[%s2559 + $0x60] sm:$0xff]
      %v2573 = vld [vmem:[%s2559 + $0x68] sm:$0xff]
      %v2574 = vld [vmem:[%s2559 + $0x70] sm:$0xff]
      %v2575 = vld [vmem:[%s2559 + $0x78] sm:$0xff]
      %v2576 = vld [vmem:[%s2559 + $0x80] sm:$0xff]
      %v2577 = vld [vmem:[%s2559 + $0x88] sm:$0xff]
      %v2578 = vld [vmem:[%s2559 + $0x90] sm:$0xff]
      %v2579 = vld [vmem:[%s2559 + $0x98] sm:$0xff]
      %v2580 = vld [vmem:[%s2559 + $0xa0] sm:$0xff]
      %v2581 = vld [vmem:[%s2559 + $0xa8] sm:$0xff]
      %v2582 = vld [vmem:[%s2559 + $0xb0] sm:$0xff]
      %v2583 = vld [vmem:[%s2559 + $0xb8] sm:$0xff]
      %v2584 = vld [vmem:[%s2559 + $0xc0] sm:$0xff]
      %v2585 = vld [vmem:[%s2559 + $0xc8] sm:$0xff]
      %v2586 = vld [vmem:[%s2559 + $0xd0] sm:$0xff]
      %v2587 = vld [vmem:[%s2559 + $0xd8] sm:$0xff]
      %v2588 = vld [vmem:[%s2559 + $0xe0] sm:$0xff]
      %v2589 = vld [vmem:[%s2559 + $0xe8] sm:$0xff]
      %v2590 = vld [vmem:[%s2559 + $0xf0] sm:$0xff]
      %v2591 = vld [vmem:[%s2559 + $0xf8] sm:$0xff]
      %v2592 = vld [vmem:[%s2559 + $0x100] sm:$0xff]
      %v2593 = vld [vmem:[%s2559 + $0x108] sm:$0xff]
      %v2594 = vld [vmem:[%s2559 + $0x110] sm:$0xff]
      %v2595 = vld [vmem:[%s2559 + $0x118] sm:$0xff]
      %v2596 = vld [vmem:[%s2559 + $0x120] sm:$0xff]
      %v2597 = vld [vmem:[%s2559 + $0x128] sm:$0xff]
      %v2598 = vld [vmem:[%s2559 + $0x130] sm:$0xff]
      %v2599 = vld [vmem:[%s2559 + $0x138] sm:$0xff]
      %v2600 = vld [vmem:[%s2559 + $0x140] sm:$0xff]
      %v2601 = vld [vmem:[%s2559 + $0x148] sm:$0xff]
      %v2602 = vld [vmem:[%s2559 + $0x150] sm:$0xff]
      %v2603 = vld [vmem:[%s2559 + $0x158] sm:$0xff]
      %v2604 = vld [vmem:[%s2559 + $0x160] sm:$0xff]
      %v2605 = vld [vmem:[%s2559 + $0x168] sm:$0xff]
      %v2606 = vld [vmem:[%s2559 + $0x170] sm:$0xff]
      %v2607 = vld [vmem:[%s2559 + $0x178] sm:$0xff]
      %v2608 = vld [vmem:[%s2 + $0x5] sm:$0x1]
      %v2609 = vperm.slane %v2608, 0
      %v2610 = vrot.slane %v2501, 3
      %v2611 = vrot.slane %v2502, 3
      %v2612 = vsel %vm1203, %v2610, %v2611
      %v2613 = vrot.slane %v2523, 3
      %v2614 = vrot.slane %v2525, 3
      %v2615 = vsel %vm1203, %v2613, %v2614
      %v2616 = vrot.slane %v2542, 3
      %v2617 = vrot.slane %v2544, 3
      %v2618 = vsel %vm1203, %v2616, %v2617
      %v2619 = vrot.slane %v2503, 3
      %v2620 = vsel %vm1203, %v2611, %v2619
      %v2621 = vrot.slane %v2527, 3
      %v2622 = vsel %vm1203, %v2614, %v2621
      %v2623 = vrot.slane %v2546, 3
      %v2624 = vsel %vm1203, %v2617, %v2623
      %v2625 = vrot.slane %v2504, 3
      %v2626 = vsel %vm1203, %v2619, %v2625
      %v2627 = vrot.slane %v2529, 3
      %v2628 = vsel %vm1203, %v2621, %v2627
      %v2629 = vrot.slane %v2548, 3
      %v2630 = vsel %vm1203, %v2623, %v2629
      %v2631 = vrot.slane %v2505, 3
      %v2632 = vsel %vm1203, %v2625, %v2631
      %v2633 = vrot.slane %v2531, 3
      %v2634 = vsel %vm1203, %v2627, %v2633
      %v2635 = vrot.slane %v2550, 3
      %v2636 = vsel %vm1203, %v2629, %v2635
      %v2637 = vrot.slane %v2506, 3
      %v2638 = vsel %vm1203, %v2631, %v2637
      %v2639 = vrot.slane %v2533, 3
      %v2640 = vsel %vm1203, %v2633, %v2639
      %v2641 = vrot.slane %v2552, 3
      %v2642 = vsel %vm1203, %v2635, %v2641
      %v2643 = vrot.slane %v2507, 3
      %v2644 = vsel %vm1203, %v2637, %v2643
      %v2645 = vrot.slane %v2535, 3
      %v2646 = vsel %vm1203, %v2639, %v2645
      %v2647 = vrot.slane %v2554, 3
      %v2648 = vsel %vm1203, %v2641, %v2647
      %v2649 = vrot.slane %v2508, 3
      %v2650 = vsel %vm1203, %v2643, %v2649
      %v2651 = vrot.slane %v2537, 3
      %v2652 = vsel %vm1203, %v2645, %v2651
      %v2653 = vrot.slane %v2556, 3
      %v2654 = vsel %vm1203, %v2647, %v2653
      %v2655 = vrot.slane %v2509, 3
      %v2656 = vsel %vm1203, %v2649, %v2655
      %v2657 = vrot.slane %v2539, 3
      %v2658 = vsel %vm1203, %v2651, %v2657
      %v2659 = vrot.slane %v2558, 3
      %v2660 = vsel %vm1203, %v2653, %v2659
      %v2661 = vrot.slane %v2510, 3
      %v2662 = vsel %vm1203, %v2655, %v2661
      %v2663 = vrot.slane %v2538, 3
      %v2664 = vsel %vm1203, %v2657, %v2663
      %v2665 = vrot.slane %v2557, 3
      %v2666 = vsel %vm1203, %v2659, %v2665
      %2694 = vmatpush.msra.mxu0 %v2575
      %2695 = vmatpush.msra.mxu0 %v2574
      %2696 = vmatpush.msra.mxu0 %v2573
      %2697 = vmatpush.msra.mxu0 %v2572
      %2698 = vmatpush.msra.mxu0 %v2571
      %2699 = vmatpush.msra.mxu0 %v2570
      %2700 = vmatpush.msra.mxu0 %v2569
      %2701 = vmatpush.msra.mxu0 %v2568
      %2702 = vmatpush.msra.mxu0 %v2567
      %2703 = vmatpush.msra.mxu0 %v2566
      %2704 = vmatpush.msra.mxu0 %v2565
      %2705 = vmatpush.msra.mxu0 %v2564
      %2706 = vmatpush.msra.mxu0 %v2563
      %2707 = vmatpush.msra.mxu0 %v2562
      %2708 = vmatpush.msra.mxu0 %v2561
      %2709 = vmatpush.msra.mxu0 %v2560
      %2710 = vmatmul.f32.gmra.mxu0 %v2612
      %v2711 = vpop.f32.mrf.mxu0
      %v2712 = vadd.f32 %v2609, %v2711
      %2713 = vmatmul.f32.gmra.mxu0 %v2620
      %v2714 = vpop.f32.mrf.mxu0
      %v2715 = vadd.f32 %v2609, %v2714
      %2716 = vmatmul.f32.gmra.mxu0 %v2626
      %v2717 = vpop.f32.mrf.mxu0
      %v2718 = vadd.f32 %v2609, %v2717
      %2719 = vmatmul.f32.gmra.mxu0 %v2632
      %v2720 = vpop.f32.mrf.mxu0
      %v2721 = vadd.f32 %v2609, %v2720
      %2722 = vmatmul.f32.gmra.mxu0 %v2638
      %v2723 = vpop.f32.mrf.mxu0
      %v2724 = vadd.f32 %v2609, %v2723
      %2725 = vmatmul.f32.gmra.mxu0 %v2644
      %v2726 = vpop.f32.mrf.mxu0
      %v2727 = vadd.f32 %v2609, %v2726
      %2728 = vmatmul.f32.gmra.mxu0 %v2650
      %v2729 = vpop.f32.mrf.mxu0
      %v2730 = vadd.f32 %v2609, %v2729
      %2731 = vmatmul.f32.gmra.mxu0 %v2656
      %v2732 = vpop.f32.mrf.mxu0
      %v2733 = vadd.f32 %v2609, %v2732
      %2734 = vmatmul.f32.gmra.mxu0 %v2662
      %v2735 = vpop.f32.mrf.mxu0
      %v2736 = vadd.f32 %v2609, %v2735
      %2737 = vdwg.mxu0
      %2738 = vmatpush.msra.mxu0 %v2591
      %2739 = vmatpush.msra.mxu0 %v2590
      %2740 = vmatpush.msra.mxu0 %v2589
      %2741 = vmatpush.msra.mxu0 %v2588
      %2742 = vmatpush.msra.mxu0 %v2587
      %2743 = vmatpush.msra.mxu0 %v2586
      %2744 = vmatpush.msra.mxu0 %v2585
      %2745 = vmatpush.msra.mxu0 %v2584
      %2746 = vmatpush.msra.mxu0 %v2583
      %2747 = vmatpush.msra.mxu0 %v2582
      %2748 = vmatpush.msra.mxu0 %v2581
      %2749 = vmatpush.msra.mxu0 %v2580
      %2750 = vmatpush.msra.mxu0 %v2579
      %2751 = vmatpush.msra.mxu0 %v2578
      %2752 = vmatpush.msra.mxu0 %v2577
      %2753 = vmatpush.msra.mxu0 %v2576
      %2754 = vmatmul.f32.gmra.mxu0 %v2615
      %v2755 = vpop.f32.mrf.mxu0
      %v2756 = vadd.f32 %v2712, %v2755
      %2757 = vmatmul.f32.gmra.mxu0 %v2622
      %v2758 = vpop.f32.mrf.mxu0
      %v2759 = vadd.f32 %v2715, %v2758
      %2760 = vmatmul.f32.gmra.mxu0 %v2628
      %v2761 = vpop.f32.mrf.mxu0
      %v2762 = vadd.f32 %v2718, %v2761
      %2763 = vmatmul.f32.gmra.mxu0 %v2634
      %v2764 = vpop.f32.mrf.mxu0
      %v2765 = vadd.f32 %v2721, %v2764
      %2766 = vmatmul.f32.gmra.mxu0 %v2640
      %v2767 = vpop.f32.mrf.mxu0
      %v2768 = vadd.f32 %v2724, %v2767
      %2769 = vmatmul.f32.gmra.mxu0 %v2646
      %v2770 = vpop.f32.mrf.mxu0
      %v2771 = vadd.f32 %v2727, %v2770
      %2772 = vmatmul.f32.gmra.mxu0 %v2652
      %v2773 = vpop.f32.mrf.mxu0
      %v2774 = vadd.f32 %v2730, %v2773
      %2775 = vmatmul.f32.gmra.mxu0 %v2658
      %v2776 = vpop.f32.mrf.mxu0
      %v2777 = vadd.f32 %v2733, %v2776
      %2778 = vmatmul.f32.gmra.mxu0 %v2664
      %v2779 = vpop.f32.mrf.mxu0
      %v2780 = vadd.f32 %v2736, %v2779
      %2781 = vdwg.mxu0
      %2782 = vmatpush.msra.mxu0 %v2607
      %2783 = vmatpush.msra.mxu0 %v2606
      %2784 = vmatpush.msra.mxu0 %v2605
      %2785 = vmatpush.msra.mxu0 %v2604
      %2786 = vmatpush.msra.mxu0 %v2603
      %2787 = vmatpush.msra.mxu0 %v2602
      %2788 = vmatpush.msra.mxu0 %v2601
      %2789 = vmatpush.msra.mxu0 %v2600
      %2790 = vmatpush.msra.mxu0 %v2599
      %2791 = vmatpush.msra.mxu0 %v2598
      %2792 = vmatpush.msra.mxu0 %v2597
      %2793 = vmatpush.msra.mxu0 %v2596
      %2794 = vmatpush.msra.mxu0 %v2595
      %2795 = vmatpush.msra.mxu0 %v2594
      %2796 = vmatpush.msra.mxu0 %v2593
      %2797 = vmatpush.msra.mxu0 %v2592
      %2798 = vmatmul.f32.gmra.mxu0 %v2618
      %v2799 = vpop.f32.mrf.mxu0
      %v2800 = vadd.f32 %v2756, %v2799
      %2801 = vmatmul.f32.gmra.mxu0 %v2624
      %v2802 = vpop.f32.mrf.mxu0
      %v2803 = vadd.f32 %v2759, %v2802
      %2804 = vmatmul.f32.gmra.mxu0 %v2630
      %v2805 = vpop.f32.mrf.mxu0
      %v2806 = vadd.f32 %v2762, %v2805
      %2807 = vmatmul.f32.gmra.mxu0 %v2636
      %v2808 = vpop.f32.mrf.mxu0
      %v2809 = vadd.f32 %v2765, %v2808
      %2810 = vmatmul.f32.gmra.mxu0 %v2642
      %v2811 = vpop.f32.mrf.mxu0
      %v2812 = vadd.f32 %v2768, %v2811
      %2813 = vmatmul.f32.gmra.mxu0 %v2648
      %v2814 = vpop.f32.mrf.mxu0
      %v2815 = vadd.f32 %v2771, %v2814
      %2816 = vmatmul.f32.gmra.mxu0 %v2654
      %v2817 = vpop.f32.mrf.mxu0
      %v2818 = vadd.f32 %v2774, %v2817
      %2819 = vmatmul.f32.gmra.mxu0 %v2660
      %v2820 = vpop.f32.mrf.mxu0
      %v2821 = vadd.f32 %v2777, %v2820
      %2822 = vmatmul.f32.gmra.mxu0 %v2666
      %v2823 = vpop.f32.mrf.mxu0
      %v2824 = vadd.f32 %v2780, %v2823
      %2825 = vdwg.mxu0
      %vm2835 = vcmask 1043456
      %v2836 = vrot.slane %v2800, 4
      %v2837 = vrot.slane %v2803, 4
      %v2838 = vsel %vm2835, %v2836, %v2837
      %v2839 = vrot.slane %v2806, 4
      %v2840 = vsel %vm2835, %v2837, %v2839
      %v2841 = vrot.slane %v2809, 4
      %v2842 = vsel %vm2835, %v2839, %v2841
      %v2843 = vrot.slane %v2812, 4
      %v2844 = vsel %vm2835, %v2841, %v2843
      %v2845 = vrot.slane %v2815, 4
      %v2846 = vsel %vm2835, %v2843, %v2845
      %v2847 = vrot.slane %v2818, 4
      %v2848 = vsel %vm2835, %v2845, %v2847
      %v2849 = vrot.slane %v2821, 4
      %v2850 = vsel %vm2835, %v2847, %v2849
      %v2851 = vrot.slane %v2824, 4
      %v2852 = vsel %vm2835, %v2849, %v2851
      %v2861 = vsel %vm627, %v2838, 0.0
      %v2862 = vsel %vm628, %v2840, 0.0
      %v2863 = vsel %vm629, %v2842, 0.0
      %v2864 = vsel %vm630, %v2844, 0.0
      %v2865 = vsel %vm631, %v2846, 0.0
      %v2866 = vsel %vm632, %v2848, 0.0
      %v2867 = vsel %vm633, %v2850, 0.0
      %v2868 = vsel %vm634, %v2852, 0.0
      %v2869 = vadd.f32 %v2861, %v2057
      %v2870 = vadd.f32 %v2862, %v2058
      %v2871 = vadd.f32 %v2863, %v2059
      %v2872 = vadd.f32 %v2864, %v2060
      %v2873 = vadd.f32 %v2865, %v2061
      %v2874 = vadd.f32 %v2866, %v2062
      %v2875 = vadd.f32 %v2867, %v2063
      %v2876 = vadd.f32 %v2868, %v2064
      %2877 = vst [vmem:[%s206] sm:$0xff] %v2869
      %2878 = vst [vmem:[%s206 + $0x8] sm:$0xff] %v2870
      %2879 = vst [vmem:[%s206 + $0x10] sm:$0xff] %v2871
      %2880 = vst [vmem:[%s206 + $0x18] sm:$0xff] %v2872
      %2881 = vst [vmem:[%s206 + $0x20] sm:$0xff] %v2873
      %2882 = vst [vmem:[%s206 + $0x28] sm:$0xff] %v2874
      %2883 = vst [vmem:[%s206 + $0x30] sm:$0xff] %v2875
      %2884 = vst [vmem:[%s206 + $0x38] sm:$0xff] %v2876
      %s2885 = smul.u32 8, %s19
      %p2886 = scmp.lt.s32.totalorder %s18, 1
      %s2887 = scalar_select %p2886, %s18, 1
      %p2888 = scmp.lt.s32.totalorder %s2885, 23
      %s2889 = scalar_select %p2888, %s2885, 23
      %s2890 = smul.addr %s2887, 24
      %s2891 = sadd.s32 %s2889, %s2890
      %s2892 = smul.addr %s2891, 8
      %s2893 = scalar_lea.vmem %s3, %s2892
      // Predicated region
      $region33: #{_resblock_run.1} parent=31 // pred_check
        %p2894 = pneg %p116
      $region34: #{_resblock_run.1} parent=31 // pred_check_branch
        %2896 = sbr.rel (%p2894) target = $region36
      $region35: #{_resblock_run.1} parent=31 // pred_region
        %s2897 = smul.u32 8, %s19
      $region36: #{_resblock_run.1} parent=31 // pred_fallthru
        _
    $region32: #{_resblock_run.1} parent=5 // pred_fallthru
      _
    %p2898 = scmp.le.s32.totalorder 2, %s9
    // Predicated region
    $region37: #{_resblock_run.1} parent=5 // pred_check
      %p2899 = pneg %p2898
    $region38: #{_resblock_run.1} parent=5 // pred_check_branch
      %2901 = sbr.rel (%p2899) target = $region40
    $region39: #{_resblock_run.1} parent=5 // pred_region
      %s2902 = ssub.s32 %s9, 2
      // Predicated region
      $region41: #{_resblock_run.1} parent=39 // pred_check
        %p2903 = pneg %p122
      $region42: #{_resblock_run.1} parent=39 // pred_check_branch
        %2905 = sbr.rel (%p2903) target = $region44
      $region43: #{_resblock_run.1} parent=39 // pred_region
        %s2906 = smul.u32 8, %s21
        %p2907 = scmp.lt.s32.totalorder %s20, 1
        %s2908 = scalar_select %p2907, %s20, 1
        %p2909 = scmp.lt.s32.totalorder %s2906, 23
        %s2910 = scalar_select %p2909, %s2906, 23
        %s2911 = smul.addr %s2908, 24
        %s2912 = sadd.s32 %s2910, %s2911
        %s2913 = smul.addr %s2912, 8
        %s2914 = scalar_lea.vmem %s3, %s2913
      $region44: #{_resblock_run.1} parent=39 // pred_fallthru
        _
    $region40: #{_resblock_run.1} parent=5 // pred_fallthru
      _
  $region6: #{_resblock_run.1} parent=0 // loop_footer
    %s13 = sadd.s32 1, %s9
  $region7: #{_resblock_run.1} parent=0 // loop_footer_branch
    %8 = sbr.rel target = $region3
  $region8: #{_resblock_run.1} parent=0 // loop_exit
    _

</llo_original>
